<compile_context>
chip_gen: v5e
topology: v5e:2x2
jax: 0.10.0
libtpu: 0.0.40
codegen_flags: <defaults>
</compile_context>

<pallas_src>
import jax
import jax.numpy as jnp
from jax import lax
from jax.experimental import pallas as pl
from jax.experimental.pallas import tpu as pltpu


def _round_up(x, m):
    return ((x + m - 1) // m) * m


# ---------------------------------------------------------------------------
# Kernel 1: time-blocked GRU recurrence.
# ---------------------------------------------------------------------------
def _make_gru_kernel(tc_steps, seq_len, seq_pad, h_pad):
    def kernel(x_ref, h0_ref, bi_ref, bhn_ref, wih_hbm, whh_hbm,   # inputs
               hT_ref,                                             # output
               wih_v, whh_v, h_scr, sem):                          # scratch
        tc = pl.program_id(0)

        @pl.when(tc == 0)
        def _():
            # Single-buffered weight load: DMA the constant GRU weights from
            # HBM into VMEM scratch exactly once, at the first grid step.
            c_ih = pltpu.make_async_copy(wih_hbm, wih_v, sem.at[0])
            c_hh = pltpu.make_async_copy(whh_hbm, whh_v, sem.at[1])
            c_ih.start()
            c_hh.start()
            h_scr[...] = h0_ref[...]
            c_ih.wait()
            c_hh.wait()

        def step(i, h):
            x_t = x_ref[i]                                          # (B, E) bf16
            gi = jnp.dot(x_t, wih_v[...],
                         preferred_element_type=jnp.float32) + bi_ref[...]
            gh = jnp.dot(h.astype(wih_v.dtype), whh_v[...],
                         preferred_element_type=jnp.float32)
            r = jax.nn.sigmoid(gi[:, :h_pad] + gh[:, :h_pad])
            z = jax.nn.sigmoid(gi[:, h_pad:2 * h_pad] + gh[:, h_pad:2 * h_pad])
            n = jnp.tanh(gi[:, 2 * h_pad:] + r * (gh[:, 2 * h_pad:] + bhn_ref[...]))
            h_new = (1.0 - z) * n + z * h
            if seq_pad != seq_len:          # mask padded trailing timesteps
                h_new = jnp.where(tc * tc_steps + i < seq_len, h_new, h)
            return h_new

        h = lax.fori_loop(0, tc_steps, step, h_scr[...], unroll=True)
        h_scr[...] = h
        hT_ref[...] = h

    return kernel


# ---------------------------------------------------------------------------
# Kernel 2: vocab-tiled output projection.
# ---------------------------------------------------------------------------
def _projection_kernel(h_ref, w_ref, b_ref, logits_ref):
    h = h_ref[...].astype(w_ref.dtype)
    logits_ref[...] = (
        jnp.dot(h, w_ref[...], preferred_element_type=jnp.float32) + b_ref[...])


# ---------------------------------------------------------------------------
# Kernel 3: row-wise log-softmax.
# ---------------------------------------------------------------------------
def _log_softmax_kernel(logits_ref, logp_ref):
    x = logits_ref[...]
    m = jnp.max(x, axis=-1, keepdims=True)
    s = x - m
    lse = jnp.log(jnp.sum(jnp.exp(s), axis=-1, keepdims=True))
    logp_ref[...] = s - lse


# ---------------------------------------------------------------------------
# Wrapper: embedding gather (glue) + padding + the three pallas_calls.
# ---------------------------------------------------------------------------
def decoder_forward(tokens, h, params, *, matmul_dtype=jnp.bfloat16):
    """tokens: (batch, seq) int32;  h: (1, batch, hid) float32."""
    f32 = jnp.float32
    emb_table = params["embedding"]                 # (vocab, tar_emb)
    xe = emb_table[tokens.T]                        # (seq, batch, emb) glue gather

    T, B, E = xe.shape
    Hd = params["whh_t"].shape[0]
    V = params["wout_t"].shape[1]

    # ---- TPU-friendly padded shapes -----------------------------------------
    B_p = _round_up(B, 8)                    # sublane
    E_p = _round_up(E, 128)                  # lane
    H_p = _round_up(Hd, 128)                 # lane
    TV = min(1024, _round_up(V, 128))        # vocab tile for the projection
    V_p = _round_up(V, TV)
    TC = min(T, 16)                          # timesteps per grid step
    T_p = _round_up(T, TC)

    # ---- pad + cast operands -------------------------------------------------
    xp = (jnp.zeros((T_p, B_p, E_p), matmul_dtype)
          .at[:T, :B, :E].set(xe.astype(matmul_dtype)))
    h0p = jnp.zeros((B_p, H_p), f32).at[:B, :Hd].set(h[0])

    def pad_gru_weight(w, in_dim, in_pad):   # (in_dim, 3*Hd) -> (in_pad, 3*H_p)
        out = jnp.zeros((in_pad, 3 * H_p), matmul_dtype)
        for g in range(3):
            out = out.at[:in_dim, g * H_p:g * H_p + Hd].set(
                w[:, g * Hd:(g + 1) * Hd].astype(matmul_dtype))
        return out

    wih_p = pad_gru_weight(params["wih_t"], E, E_p)
    whh_p = pad_gru_weight(params["whh_t"], Hd, H_p)

    bih = params["bih"][0]
    bhh = params["bhh"][0]
    b_i = jnp.zeros((1, 3 * H_p), f32)
    b_i = b_i.at[0, 0:Hd].set(bih[0:Hd] + bhh[0:Hd])                    # r (folded)
    b_i = b_i.at[0, H_p:H_p + Hd].set(bih[Hd:2 * Hd] + bhh[Hd:2 * Hd])  # z (folded)
    b_i = b_i.at[0, 2 * H_p:2 * H_p + Hd].set(bih[2 * Hd:3 * Hd])       # n (input)
    b_hn = jnp.zeros((1, H_p), f32).at[0, :Hd].set(bhh[2 * Hd:3 * Hd])  # n (hidden)

    wout_p = (jnp.zeros((H_p, V_p), matmul_dtype)
              .at[:Hd, :V].set(params["wout_t"].astype(matmul_dtype)))
    # Padded vocab columns get -1e30 so they contribute ~0 to the softmax.
    bout_p = jnp.full((1, V_p), -1e30, f32).at[0, :V].set(params["bout"][0])

    # ---- kernel 1: GRU recurrence ---------------------------------------------
    gru_kernel = _make_gru_kernel(TC, T, T_p, H_p)
    hT = pl.pallas_call(
        gru_kernel,
        out_shape=jax.ShapeDtypeStruct((B_p, H_p), f32),
        grid_spec=pltpu.PrefetchScalarGridSpec(
            num_scalar_prefetch=0,
            grid=(T_p // TC,),
            in_specs=[
                pl.BlockSpec((TC, B_p, E_p), lambda t: (t, 0, 0)),   # x time-chunk
                pl.BlockSpec((B_p, H_p), lambda t: (0, 0)),          # h0
                pl.BlockSpec((1, 3 * H_p), lambda t: (0, 0)),        # folded bias
                pl.BlockSpec((1, H_p), lambda t: (0, 0)),            # b_hn
                pl.BlockSpec(memory_space=pl.ANY),                   # W_ih (HBM)
                pl.BlockSpec(memory_space=pl.ANY),                   # W_hh (HBM)
            ],
            out_specs=pl.BlockSpec((B_p, H_p), lambda t: (0, 0)),
            scratch_shapes=[
                pltpu.VMEM((E_p, 3 * H_p), matmul_dtype),            # W_ih (VMEM)
                pltpu.VMEM((H_p, 3 * H_p), matmul_dtype),            # W_hh (VMEM)
                pltpu.VMEM((B_p, H_p), f32),                         # carried h
                pltpu.SemaphoreType.DMA((2,)),
            ]),
        compiler_params=pltpu.CompilerParams(
            dimension_semantics=("arbitrary",)),
    )(xp, h0p, b_i, b_hn, wih_p, whh_p)

    # ---- kernel 2: vocab-tiled projection -------------------------------------
    logits = pl.pallas_call(
        _projection_kernel,
        out_shape=jax.ShapeDtypeStruct((B_p, V_p), f32),
        grid_spec=pltpu.PrefetchScalarGridSpec(
            num_scalar_prefetch=0,
            grid=(V_p // TV,),
            in_specs=[
                pl.BlockSpec((B_p, H_p), lambda j: (0, 0)),          # h_T
                pl.BlockSpec((H_p, TV), lambda j: (0, j)),           # W_out tile
                pl.BlockSpec((1, TV), lambda j: (0, j)),             # b_out tile
            ],
            out_specs=pl.BlockSpec((B_p, TV), lambda j: (0, j))),
        compiler_params=pltpu.CompilerParams(
            dimension_semantics=("parallel",)),
    )(hT, wout_p, bout_p)

    # ---- kernel 3: row-wise log-softmax ---------------------------------------
    logp = pl.pallas_call(
        _log_softmax_kernel,
        out_shape=jax.ShapeDtypeStruct((B_p, V_p), f32),
        grid_spec=pltpu.PrefetchScalarGridSpec(
            num_scalar_prefetch=0,
            grid=(B_p // 8,),
            in_specs=[pl.BlockSpec((8, V_p), lambda b: (b, 0))],
            out_specs=pl.BlockSpec((8, V_p), lambda b: (b, 0))),
        compiler_params=pltpu.CompilerParams(
            dimension_semantics=("parallel",)),
    )(logits)

    # Strip padding; h keeps its (n_layers=1, batch, hid) shape.
    return logp[:B, :V], hT[:B, :Hd][None]


def init_params(key, vocab_size, tar_emb, hid_dim):
    ks = jax.random.split(key, 8)
    u = lambda k, shape, s: jax.random.uniform(k, shape, jnp.float32, -s, s)
    gru_s = 1.0 / jnp.sqrt(hid_dim)
    out_s = 1.0 / jnp.sqrt(hid_dim)
    emb = jax.random.normal(ks[0], (vocab_size, tar_emb), jnp.float32)
    emb = emb.at[0].set(0.0)                         # padding_idx=0 row is zeros
    return {
        "embedding": emb,
        # Pre-transposed GRU weights: (in_dim, 3*hid), gate order [r, z, n].
        "wih_t": u(ks[1], (tar_emb, 3 * hid_dim), gru_s),
        "whh_t": u(ks[2], (hid_dim, 3 * hid_dim), gru_s),
        "bih":   u(ks[3], (1, 3 * hid_dim), gru_s),
        "bhh":   u(ks[4], (1, 3 * hid_dim), gru_s),
        # Output projection, pre-transposed: (hid, vocab).
        "wout_t": u(ks[5], (hid_dim, vocab_size), out_s),
        "bout":   u(ks[6], (1, vocab_size), out_s),
    }
    # TODO(synk): enc2dec (used only in init_hidden, not in forward) is omitted.


def reference_forward(tokens, h, params, matmul_dtype=jnp.bfloat16):
    """Pure-JAX reference mirroring the kernel's bf16-matmul / f32-accumulate math."""
    xe = params["embedding"][tokens.T]
    Hd = params["whh_t"].shape[0]
    wih = params["wih_t"].astype(matmul_dtype)
    whh = params["whh_t"].astype(matmul_dtype)
    h_t = h[0]
    for t in range(xe.shape[0]):
        gi = jnp.dot(xe[t].astype(matmul_dtype), wih,
                     preferred_element_type=jnp.float32) + params["bih"]
        gh = jnp.dot(h_t.astype(matmul_dtype), whh,
                     preferred_element_type=jnp.float32) + params["bhh"]
        r = jax.nn.sigmoid(gi[:, :Hd] + gh[:, :Hd])
        z = jax.nn.sigmoid(gi[:, Hd:2 * Hd] + gh[:, Hd:2 * Hd])
        n = jnp.tanh(gi[:, 2 * Hd:] + r * gh[:, 2 * Hd:])
        h_t = (1.0 - z) * n + z * h_t
    logits = jnp.dot(h_t.astype(matmul_dtype),
                     params["wout_t"].astype(matmul_dtype),
                     preferred_element_type=jnp.float32) + params["bout"]
    return jax.nn.log_softmax(logits, axis=-1), h_t[None]


if __name__ == "__main__":
    # Small shapes consistent with the module's forward.
    batch, seq = 2, 8
    vocab_size, tar_emb, hid_dim = 64, 32, 32

    key = jax.random.PRNGKey(0)
    kp, kt, kh = jax.random.split(key, 3)

    params = init_params(kp, vocab_size, tar_emb, hid_dim)
    tokens = jax.random.randint(kt, (batch, seq), 0, vocab_size, jnp.int32)
    h0 = jax.random.normal(kh, (1, batch, hid_dim), jnp.float32)

    fwd = jax.jit(decoder_forward)
    logp, h_out = fwd(tokens, h0, params)
    jax.block_until_ready((logp, h_out))

    ref_logp, ref_h = reference_forward(tokens, h0, params)
    assert logp.shape == (batch, vocab_size)
    assert h_out.shape == (1, batch, hid_dim)
    # bf16 matmuls (f32 accumulate) in both paths -> modest tolerance.
    assert jnp.allclose(logp, ref_logp, rtol=2e-3, atol=2e-3)
    assert jnp.allclose(h_out, ref_h, rtol=2e-3, atol=2e-3)

    print("KERNEL_OK")
</pallas_src>

<mosaic_0001>
module attributes {stable_mosaic.version = 11 : i64} {
  func.func @_log_softmax_kernel(%arg0: i32, %arg1: memref<8x128xf32, #tpu.memory_space<vmem>>, %arg2: memref<8x128xf32, #tpu.memory_space<vmem>>) attributes {dimension_semantics = [#tpu.dimension_semantics<parallel>], iteration_bounds = array<i64: 1>, scalar_prefetch = 0 : i64, scratch_operands = 0 : i64, tpu.core_type = #tpu.core_type<tc>, window_params = [{transform_indices = @transform_0, window_bounds = array<i64: 8, 128>}, {transform_indices = @transform_1, window_bounds = array<i64: 8, 128>}]} {
    %c0 = arith.constant 0 : index
    %c0_0 = arith.constant 0 : index
    %0 = vector.load %arg1[%c0, %c0_0] : memref<8x128xf32, #tpu.memory_space<vmem>>, vector<8x128xf32>
    %cst = arith.constant dense<0xFF800000> : vector<8xf32>
    %1 = vector.multi_reduction <maximumf>, %0, %cst [1] : vector<8x128xf32> to vector<8xf32>
    %2 = vector.shape_cast %1 : vector<8xf32> to vector<8x1xf32>
    %3 = vector.broadcast %2 : vector<8x1xf32> to vector<8x128xf32>
    %4 = arith.subf %0, %3 : vector<8x128xf32>
    %5 = math.exp %4 : vector<8x128xf32>
    %cst_1 = arith.constant dense<0.000000e+00> : vector<8xf32>
    %6 = vector.multi_reduction <add>, %5, %cst_1 [1] : vector<8x128xf32> to vector<8xf32>
    %7 = vector.shape_cast %6 : vector<8xf32> to vector<8x1xf32>
    %8 = math.log %7 : vector<8x1xf32>
    %9 = vector.broadcast %8 : vector<8x1xf32> to vector<8x128xf32>
    %10 = arith.subf %4, %9 : vector<8x128xf32>
    %c0_2 = arith.constant 0 : index
    %c0_3 = arith.constant 0 : index
    %11 = vector.load %arg2[%c0_2, %c0_3] : memref<8x128xf32, #tpu.memory_space<vmem>>, vector<8x128xf32>
    tpu.vector_store %arg2[%c0_2, %c0_3], %10 {strides = array<i32>} : memref<8x128xf32, #tpu.memory_space<vmem>>, vector<8x128xf32>,
    return
  }
  func.func @transform_0(%arg0: i32) -> (i32, i32) {
    %c0_i32 = arith.constant 0 : i32
    %c0_i32_0 = arith.constant 0 : i32
    return %arg0, %c0_i32 : i32, i32
  }
  func.func @transform_1(%arg0: i32) -> (i32, i32) {
    %c0_i32 = arith.constant 0 : i32
    %c0_i32_0 = arith.constant 0 : i32
    return %arg0, %c0_i32 : i32, i32
  }
}

module attributes {stable_mosaic.version = 11 : i64} {
  func.func @_projection_kernel(%arg0: i32, %arg1: memref<8x128xf32, #tpu.memory_space<vmem>>, %arg2: memref<128x128xbf16, #tpu.memory_space<vmem>>, %arg3: memref<1x128xf32, #tpu.memory_space<vmem>>, %arg4: memref<8x128xf32, #tpu.memory_space<vmem>>) attributes {dimension_semantics = [#tpu.dimension_semantics<parallel>], iteration_bounds = array<i64: 1>, scalar_prefetch = 0 : i64, scratch_operands = 0 : i64, tpu.core_type = #tpu.core_type<tc>, window_params = [{pipeline_mode = #tpu.pipeline_mode<synchronous>, transform_indices = @transform_0, window_bounds = array<i64: 8, 128>}, {transform_indices = @transform_1, window_bounds = array<i64: 128, 128>}, {transform_indices = @transform_2, window_bounds = array<i64: 1, 128>}, {transform_indices = @transform_3, window_bounds = array<i64: 8, 128>}]} {
    %c0 = arith.constant 0 : index
    %c0_0 = arith.constant 0 : index
    %0 = vector.load %arg1[%c0, %c0_0] : memref<8x128xf32, #tpu.memory_space<vmem>>, vector<8x128xf32>
    %1 = arith.truncf %0 : vector<8x128xf32> to vector<8x128xbf16>
    %c0_1 = arith.constant 0 : index
    %c0_2 = arith.constant 0 : index
    %2 = vector.load %arg2[%c0_1, %c0_2] : memref<128x128xbf16, #tpu.memory_space<vmem>>, vector<128x128xbf16>
    %cst = arith.constant dense<0.000000e+00> : vector<8x128xf32>
    %3 = tpu.matmul %1, %2, %cst {dimension_numbers = #tpu.dot_dimension_numbers<[1], [0], [0], [1], [0, 0, 1, 1], [], []>} : vector<8x128xbf16>, vector<128x128xbf16>, vector<8x128xf32> -> vector<8x128xf32>
    %c0_3 = arith.constant 0 : index
    %c0_4 = arith.constant 0 : index
    %4 = vector.load %arg3[%c0_3, %c0_4] : memref<1x128xf32, #tpu.memory_space<vmem>>, vector<1x128xf32>
    %5 = vector.broadcast %4 : vector<1x128xf32> to vector<8x128xf32>
    %6 = arith.addf %3, %5 : vector<8x128xf32>
    %c0_5 = arith.constant 0 : index
    %c0_6 = arith.constant 0 : index
    %7 = vector.load %arg4[%c0_5, %c0_6] : memref<8x128xf32, #tpu.memory_space<vmem>>, vector<8x128xf32>
    tpu.vector_store %arg4[%c0_5, %c0_6], %6 {strides = array<i32>} : memref<8x128xf32, #tpu.memory_space<vmem>>, vector<8x128xf32>,
    return
  }
  func.func @transform_0(%arg0: i32) -> (i32, i32) {
    %c0_i32 = arith.constant 0 : i32
    %c0_i32_0 = arith.constant 0 : i32
    %c0_i32_1 = arith.constant 0 : i32
    return %c0_i32, %c0_i32_0 : i32, i32
  }
  func.func @transform_1(%arg0: i32) -> (i32, i32) {
    %c0_i32 = arith.constant 0 : i32
    %c0_i32_0 = arith.constant 0 : i32
    return %c0_i32, %arg0 : i32, i32
  }
  func.func @transform_2(%arg0: i32) -> (i32, i32) {
    %c0_i32 = arith.constant 0 : i32
    %c0_i32_0 = arith.constant 0 : i32
    return %c0_i32, %arg0 : i32, i32
  }
  func.func @transform_3(%arg0: i32) -> (i32, i32) {
    %c0_i32 = arith.constant 0 : i32
    %c0_i32_0 = arith.constant 0 : i32
    return %c0_i32, %arg0 : i32, i32
  }
}

module attributes {stable_mosaic.version = 11 : i64} {
  func.func @kernel(%arg0: i32, %arg1: memref<8x8x128xbf16, #tpu.memory_space<vmem>>, %arg2: memref<8x128xf32, #tpu.memory_space<vmem>>, %arg3: memref<1x384xf32, #tpu.memory_space<vmem>>, %arg4: memref<1x128xf32, #tpu.memory_space<vmem>>, %arg5: memref<128x384xbf16, #tpu.memory_space<any>>, %arg6: memref<128x384xbf16, #tpu.memory_space<any>>, %arg7: memref<8x128xf32, #tpu.memory_space<vmem>>, %arg8: memref<128x384xbf16, #tpu.memory_space<vmem>>, %arg9: memref<128x384xbf16, #tpu.memory_space<vmem>>, %arg10: memref<8x128xf32, #tpu.memory_space<vmem>>, %arg11: memref<2x!tpu.dma_semaphore, #tpu.memory_space<semaphore_mem>>) attributes {dimension_semantics = [#tpu.dimension_semantics<arbitrary>], iteration_bounds = array<i64: 1>, scalar_prefetch = 0 : i64, scratch_operands = 4 : i64, tpu.core_type = #tpu.core_type<tc>, window_params = [{transform_indices = @transform_0, window_bounds = array<i64: 8, 8, 128>}, {pipeline_mode = #tpu.pipeline_mode<synchronous>, transform_indices = @transform_1, window_bounds = array<i64: 8, 128>}, {pipeline_mode = #tpu.pipeline_mode<synchronous>, transform_indices = @transform_2, window_bounds = array<i64: 1, 384>}, {pipeline_mode = #tpu.pipeline_mode<synchronous>, transform_indices = @transform_3, window_bounds = array<i64: 1, 128>}, {}, {}, {pipeline_mode = #tpu.pipeline_mode<synchronous>, transform_indices = @transform_6, window_bounds = array<i64: 8, 128>}]} {
    %c0_i32 = arith.constant 0 : i32
    %0 = arith.cmpi eq, %arg0, %c0_i32 : i32
    %1 = arith.extui %0 : i1 to i32
    %c0_i32_0 = arith.constant 0 : i32
    %2 = arith.cmpi ne, %1, %c0_i32_0 : i32
    scf.if %2 {
      %c0_i32_126 = arith.constant 0 : i32
      %326 = tpu.memref_slice %arg11[%c0_i32_126] : memref<2x!tpu.dma_semaphore, #tpu.memory_space<semaphore_mem>> -> memref<1x!tpu.dma_semaphore, #tpu.memory_space<semaphore_mem>>
      %327 = tpu.memref_squeeze %326 : memref<1x!tpu.dma_semaphore, #tpu.memory_space<semaphore_mem>> -> memref<!tpu.dma_semaphore, #tpu.memory_space<semaphore_mem>>
      tpu.enqueue_dma source(%arg5 : memref<128x384xbf16, #tpu.memory_space<any>>) target(%arg8 : memref<128x384xbf16, #tpu.memory_space<vmem>>) target_semaphore(%327 : memref<!tpu.dma_semaphore, #tpu.memory_space<semaphore_mem>>)
      %c1_i32_127 = arith.constant 1 : i32
      %328 = tpu.memref_slice %arg11[%c1_i32_127] : memref<2x!tpu.dma_semaphore, #tpu.memory_space<semaphore_mem>> -> memref<1x!tpu.dma_semaphore, #tpu.memory_space<semaphore_mem>>
      %329 = tpu.memref_squeeze %328 : memref<1x!tpu.dma_semaphore, #tpu.memory_space<semaphore_mem>> -> memref<!tpu.dma_semaphore, #tpu.memory_space<semaphore_mem>>
      tpu.enqueue_dma source(%arg6 : memref<128x384xbf16, #tpu.memory_space<any>>) target(%arg9 : memref<128x384xbf16, #tpu.memory_space<vmem>>) target_semaphore(%329 : memref<!tpu.dma_semaphore, #tpu.memory_space<semaphore_mem>>)
      %c0_128 = arith.constant 0 : index
      %c0_129 = arith.constant 0 : index
      %330 = vector.load %arg2[%c0_128, %c0_129] : memref<8x128xf32, #tpu.memory_space<vmem>>, vector<8x128xf32>
      %c0_130 = arith.constant 0 : index
      %c0_131 = arith.constant 0 : index
      %331 = vector.load %arg10[%c0_130, %c0_131] : memref<8x128xf32, #tpu.memory_space<vmem>>, vector<8x128xf32>
      tpu.vector_store %arg10[%c0_130, %c0_131], %330 {strides = array<i32>} : memref<8x128xf32, #tpu.memory_space<vmem>>, vector<8x128xf32>,
      %c0_i32_132 = arith.constant 0 : i32
      %332 = tpu.memref_slice %arg11[%c0_i32_132] : memref<2x!tpu.dma_semaphore, #tpu.memory_space<semaphore_mem>> -> memref<1x!tpu.dma_semaphore, #tpu.memory_space<semaphore_mem>>
      %333 = tpu.memref_squeeze %332 : memref<1x!tpu.dma_semaphore, #tpu.memory_space<semaphore_mem>> -> memref<!tpu.dma_semaphore, #tpu.memory_space<semaphore_mem>>
      tpu.wait_dma2 semaphore(%333 : memref<!tpu.dma_semaphore, #tpu.memory_space<semaphore_mem>>) src(%arg5 : memref<128x384xbf16, #tpu.memory_space<any>>) dst(%arg8 : memref<128x384xbf16, #tpu.memory_space<vmem>>)
      %c1_i32_133 = arith.constant 1 : i32
      %334 = tpu.memref_slice %arg11[%c1_i32_133] : memref<2x!tpu.dma_semaphore, #tpu.memory_space<semaphore_mem>> -> memref<1x!tpu.dma_semaphore, #tpu.memory_space<semaphore_mem>>
      %335 = tpu.memref_squeeze %334 : memref<1x!tpu.dma_semaphore, #tpu.memory_space<semaphore_mem>> -> memref<!tpu.dma_semaphore, #tpu.memory_space<semaphore_mem>>
      tpu.wait_dma2 semaphore(%335 : memref<!tpu.dma_semaphore, #tpu.memory_space<semaphore_mem>>) src(%arg6 : memref<128x384xbf16, #tpu.memory_space<any>>) dst(%arg9 : memref<128x384xbf16, #tpu.memory_space<vmem>>)
    } else {
    }
    %c0 = arith.constant 0 : index
    %c0_1 = arith.constant 0 : index
    %3 = vector.load %arg10[%c0, %c0_1] : memref<8x128xf32, #tpu.memory_space<vmem>>, vector<8x128xf32>
    %c0_i32_2 = arith.constant 0 : i32
    %4 = arith.index_cast %c0_i32_2 : i32 to index
    %c0_3 = arith.constant 0 : index
    %c0_4 = arith.constant 0 : index
    %5 = vector.load %arg1[%4, %c0_3, %c0_4] : memref<8x8x128xbf16, #tpu.memory_space<vmem>>, vector<1x8x128xbf16>
    %6 = vector.shape_cast %5 : vector<1x8x128xbf16> to vector<8x128xbf16>
    %c0_5 = arith.constant 0 : index
    %c0_6 = arith.constant 0 : index
    %7 = vector.load %arg8[%c0_5, %c0_6] : memref<128x384xbf16, #tpu.memory_space<vmem>>, vector<128x384xbf16>
    %cst = arith.constant dense<0.000000e+00> : vector<8x384xf32>
    %8 = tpu.matmul %6, %7, %cst {dimension_numbers = #tpu.dot_dimension_numbers<[1], [0], [0], [1], [0, 0, 1, 1], [], []>} : vector<8x128xbf16>, vector<128x384xbf16>, vector<8x384xf32> -> vector<8x384xf32>
    %c0_7 = arith.constant 0 : index
    %c0_8 = arith.constant 0 : index
    %9 = vector.load %arg3[%c0_7, %c0_8] : memref<1x384xf32, #tpu.memory_space<vmem>>, vector<1x384xf32>
    %10 = vector.broadcast %9 : vector<1x384xf32> to vector<8x384xf32>
    %11 = arith.addf %8, %10 : vector<8x384xf32>
    %12 = arith.truncf %3 : vector<8x128xf32> to vector<8x128xbf16>
    %c0_9 = arith.constant 0 : index
    %c0_10 = arith.constant 0 : index
    %13 = vector.load %arg9[%c0_9, %c0_10] : memref<128x384xbf16, #tpu.memory_space<vmem>>, vector<128x384xbf16>
    %cst_11 = arith.constant dense<0.000000e+00> : vector<8x384xf32>
    %14 = tpu.matmul %12, %13, %cst_11 {dimension_numbers = #tpu.dot_dimension_numbers<[1], [0], [0], [1], [0, 0, 1, 1], [], []>} : vector<8x128xbf16>, vector<128x384xbf16>, vector<8x384xf32> -> vector<8x384xf32>
    %15 = vector.extract_strided_slice %11 {offsets = [0, 0], sizes = [8, 128], strides = [1, 1]} : vector<8x384xf32> to vector<8x128xf32>
    %16 = vector.extract_strided_slice %14 {offsets = [0, 0], sizes = [8, 128], strides = [1, 1]} : vector<8x384xf32> to vector<8x128xf32>
    %17 = arith.addf %15, %16 : vector<8x128xf32>
    %18 = arith.negf %17 : vector<8x128xf32>
    %19 = math.exp %18 : vector<8x128xf32>
    %cst_12 = arith.constant 1.000000e+00 : f32
    %20 = vector.broadcast %cst_12 : f32 to vector<8x128xf32>
    %21 = arith.addf %20, %19 : vector<8x128xf32>
    %22 = arith.divf %20, %21 : vector<8x128xf32>
    %23 = vector.extract_strided_slice %11 {offsets = [0, 128], sizes = [8, 128], strides = [1, 1]} : vector<8x384xf32> to vector<8x128xf32>
    %24 = vector.extract_strided_slice %14 {offsets = [0, 128], sizes = [8, 128], strides = [1, 1]} : vector<8x384xf32> to vector<8x128xf32>
    %25 = arith.addf %23, %24 : vector<8x128xf32>
    %26 = arith.negf %25 : vector<8x128xf32>
    %27 = math.exp %26 : vector<8x128xf32>
    %cst_13 = arith.constant 1.000000e+00 : f32
    %28 = vector.broadcast %cst_13 : f32 to vector<8x128xf32>
    %29 = arith.addf %28, %27 : vector<8x128xf32>
    %30 = arith.divf %28, %29 : vector<8x128xf32>
    %31 = vector.extract_strided_slice %11 {offsets = [0, 256], sizes = [8, 128], strides = [1, 1]} : vector<8x384xf32> to vector<8x128xf32>
    %32 = vector.extract_strided_slice %14 {offsets = [0, 256], sizes = [8, 128], strides = [1, 1]} : vector<8x384xf32> to vector<8x128xf32>
    %c0_14 = arith.constant 0 : index
    %c0_15 = arith.constant 0 : index
    %33 = vector.load %arg4[%c0_14, %c0_15] : memref<1x128xf32, #tpu.memory_space<vmem>>, vector<1x128xf32>
    %34 = vector.broadcast %33 : vector<1x128xf32> to vector<8x128xf32>
    %35 = arith.addf %32, %34 : vector<8x128xf32>
    %36 = arith.mulf %22, %35 : vector<8x128xf32>
    %37 = arith.addf %31, %36 : vector<8x128xf32>
    %38 = math.tanh %37 : vector<8x128xf32>
    %cst_16 = arith.constant 1.000000e+00 : f32
    %39 = vector.broadcast %cst_16 : f32 to vector<8x128xf32>
    %40 = arith.subf %39, %30 : vector<8x128xf32>
    %41 = arith.mulf %40, %38 : vector<8x128xf32>
    %42 = arith.mulf %30, %3 : vector<8x128xf32>
    %43 = arith.addf %41, %42 : vector<8x128xf32>
    %c1_i32 = arith.constant 1 : i32
    %44 = arith.index_cast %c1_i32 : i32 to index
    %c0_17 = arith.constant 0 : index
    %c0_18 = arith.constant 0 : index
    %45 = vector.load %arg1[%44, %c0_17, %c0_18] : memref<8x8x128xbf16, #tpu.memory_space<vmem>>, vector<1x8x128xbf16>
    %46 = vector.shape_cast %45 : vector<1x8x128xbf16> to vector<8x128xbf16>
    %c0_19 = arith.constant 0 : index
    %c0_20 = arith.constant 0 : index
    %47 = vector.load %arg8[%c0_19, %c0_20] : memref<128x384xbf16, #tpu.memory_space<vmem>>, vector<128x384xbf16>
    %cst_21 = arith.constant dense<0.000000e+00> : vector<8x384xf32>
    %48 = tpu.matmul %46, %47, %cst_21 {dimension_numbers = #tpu.dot_dimension_numbers<[1], [0], [0], [1], [0, 0, 1, 1], [], []>} : vector<8x128xbf16>, vector<128x384xbf16>, vector<8x384xf32> -> vector<8x384xf32>
    %c0_22 = arith.constant 0 : index
    %c0_23 = arith.constant 0 : index
    %49 = vector.load %arg3[%c0_22, %c0_23] : memref<1x384xf32, #tpu.memory_space<vmem>>, vector<1x384xf32>
    %50 = vector.broadcast %49 : vector<1x384xf32> to vector<8x384xf32>
    %51 = arith.addf %48, %50 : vector<8x384xf32>
    %52 = arith.truncf %43 : vector<8x128xf32> to vector<8x128xbf16>
    %c0_24 = arith.constant 0 : index
    %c0_25 = arith.constant 0 : index
    %53 = vector.load %arg9[%c0_24, %c0_25] : memref<128x384xbf16, #tpu.memory_space<vmem>>, vector<128x384xbf16>
    %cst_26 = arith.constant dense<0.000000e+00> : vector<8x384xf32>
    %54 = tpu.matmul %52, %53, %cst_26 {dimension_numbers = #tpu.dot_dimension_numbers<[1], [0], [0], [1], [0, 0, 1, 1], [], []>} : vector<8x128xbf16>, vector<128x384xbf16>, vector<8x384xf32> -> vector<8x384xf32>
    %55 = vector.extract_strided_slice %51 {offsets = [0, 0], sizes = [8, 128], strides = [1, 1]} : vector<8x384xf32> to vector<8x128xf32>
    %56 = vector.extract_strided_slice %54 {offsets = [0, 0], sizes = [8, 128], strides = [1, 1]} : vector<8x384xf32> to vector<8x128xf32>
    %57 = arith.addf %55, %56 : vector<8x128xf32>
    %58 = arith.negf %57 : vector<8x128xf32>
    %59 = math.exp %58 : vector<8x128xf32>
    %cst_27 = arith.constant 1.000000e+00 : f32
    %60 = vector.broadcast %cst_27 : f32 to vector<8x128xf32>
    %61 = arith.addf %60, %59 : vector<8x128xf32>
    %62 = arith.divf %60, %61 : vector<8x128xf32>
    %63 = vector.extract_strided_slice %51 {offsets = [0, 128], sizes = [8, 128], strides = [1, 1]} : vector<8x384xf32> to vector<8x128xf32>
    %64 = vector.extract_strided_slice %54 {offsets = [0, 128], sizes = [8, 128], strides = [1, 1]} : vector<8x384xf32> to vector<8x128xf32>
    %65 = arith.addf %63, %64 : vector<8x128xf32>
    %66 = arith.negf %65 : vector<8x128xf32>
    %67 = math.exp %66 : vector<8x128xf32>
    %cst_28 = arith.constant 1.000000e+00 : f32
    %68 = vector.broadcast %cst_28 : f32 to vector<8x128xf32>
    %69 = arith.addf %68, %67 : vector<8x128xf32>
    %70 = arith.divf %68, %69 : vector<8x128xf32>
    %71 = vector.extract_strided_slice %51 {offsets = [0, 256], sizes = [8, 128], strides = [1, 1]} : vector<8x384xf32> to vector<8x128xf32>
    %72 = vector.extract_strided_slice %54 {offsets = [0, 256], sizes = [8, 128], strides = [1, 1]} : vector<8x384xf32> to vector<8x128xf32>
    %c0_29 = arith.constant 0 : index
    %c0_30 = arith.constant 0 : index
    %73 = vector.load %arg4[%c0_29, %c0_30] : memref<1x128xf32, #tpu.memory_space<vmem>>, vector<1x128xf32>
    %74 = vector.broadcast %73 : vector<1x128xf32> to vector<8x128xf32>
    %75 = arith.addf %72, %74 : vector<8x128xf32>
    %76 = arith.mulf %62, %75 : vector<8x128xf32>
    %77 = arith.addf %71, %76 : vector<8x128xf32>
    %78 = math.tanh %77 : vector<8x128xf32>
    %cst_31 = arith.constant 1.000000e+00 : f32
    %79 = vector.broadcast %cst_31 : f32 to vector<8x128xf32>
    %80 = arith.subf %79, %70 : vector<8x128xf32>
    %81 = arith.mulf %80, %78 : vector<8x128xf32>
    %82 = arith.mulf %70, %43 : vector<8x128xf32>
    %83 = arith.addf %81, %82 : vector<8x128xf32>
    %c2_i32 = arith.constant 2 : i32
    %84 = arith.index_cast %c2_i32 : i32 to index
    %c0_32 = arith.constant 0 : index
    %c0_33 = arith.constant 0 : index
    %85 = vector.load %arg1[%84, %c0_32, %c0_33] : memref<8x8x128xbf16, #tpu.memory_space<vmem>>, vector<1x8x128xbf16>
    %86 = vector.shape_cast %85 : vector<1x8x128xbf16> to vector<8x128xbf16>
    %c0_34 = arith.constant 0 : index
    %c0_35 = arith.constant 0 : index
    %87 = vector.load %arg8[%c0_34, %c0_35] : memref<128x384xbf16, #tpu.memory_space<vmem>>, vector<128x384xbf16>
    %cst_36 = arith.constant dense<0.000000e+00> : vector<8x384xf32>
    %88 = tpu.matmul %86, %87, %cst_36 {dimension_numbers = #tpu.dot_dimension_numbers<[1], [0], [0], [1], [0, 0, 1, 1], [], []>} : vector<8x128xbf16>, vector<128x384xbf16>, vector<8x384xf32> -> vector<8x384xf32>
    %c0_37 = arith.constant 0 : index
    %c0_38 = arith.constant 0 : index
    %89 = vector.load %arg3[%c0_37, %c0_38] : memref<1x384xf32, #tpu.memory_space<vmem>>, vector<1x384xf32>
    %90 = vector.broadcast %89 : vector<1x384xf32> to vector<8x384xf32>
    %91 = arith.addf %88, %90 : vector<8x384xf32>
    %92 = arith.truncf %83 : vector<8x128xf32> to vector<8x128xbf16>
    %c0_39 = arith.constant 0 : index
    %c0_40 = arith.constant 0 : index
    %93 = vector.load %arg9[%c0_39, %c0_40] : memref<128x384xbf16, #tpu.memory_space<vmem>>, vector<128x384xbf16>
    %cst_41 = arith.constant dense<0.000000e+00> : vector<8x384xf32>
    %94 = tpu.matmul %92, %93, %cst_41 {dimension_numbers = #tpu.dot_dimension_numbers<[1], [0], [0], [1], [0, 0, 1, 1], [], []>} : vector<8x128xbf16>, vector<128x384xbf16>, vector<8x384xf32> -> vector<8x384xf32>
    %95 = vector.extract_strided_slice %91 {offsets = [0, 0], sizes = [8, 128], strides = [1, 1]} : vector<8x384xf32> to vector<8x128xf32>
    %96 = vector.extract_strided_slice %94 {offsets = [0, 0], sizes = [8, 128], strides = [1, 1]} : vector<8x384xf32> to vector<8x128xf32>
    %97 = arith.addf %95, %96 : vector<8x128xf32>
    %98 = arith.negf %97 : vector<8x128xf32>
    %99 = math.exp %98 : vector<8x128xf32>
    %cst_42 = arith.constant 1.000000e+00 : f32
    %100 = vector.broadcast %cst_42 : f32 to vector<8x128xf32>
    %101 = arith.addf %100, %99 : vector<8x128xf32>
    %102 = arith.divf %100, %101 : vector<8x128xf32>
    %103 = vector.extract_strided_slice %91 {offsets = [0, 128], sizes = [8, 128], strides = [1, 1]} : vector<8x384xf32> to vector<8x128xf32>
    %104 = vector.extract_strided_slice %94 {offsets = [0, 128], sizes = [8, 128], strides = [1, 1]} : vector<8x384xf32> to vector<8x128xf32>
    %105 = arith.addf %103, %104 : vector<8x128xf32>
    %106 = arith.negf %105 : vector<8x128xf32>
    %107 = math.exp %106 : vector<8x128xf32>
    %cst_43 = arith.constant 1.000000e+00 : f32
    %108 = vector.broadcast %cst_43 : f32 to vector<8x128xf32>
    %109 = arith.addf %108, %107 : vector<8x128xf32>
    %110 = arith.divf %108, %109 : vector<8x128xf32>
    %111 = vector.extract_strided_slice %91 {offsets = [0, 256], sizes = [8, 128], strides = [1, 1]} : vector<8x384xf32> to vector<8x128xf32>
    %112 = vector.extract_strided_slice %94 {offsets = [0, 256], sizes = [8, 128], strides = [1, 1]} : vector<8x384xf32> to vector<8x128xf32>
    %c0_44 = arith.constant 0 : index
    %c0_45 = arith.constant 0 : index
    %113 = vector.load %arg4[%c0_44, %c0_45] : memref<1x128xf32, #tpu.memory_space<vmem>>, vector<1x128xf32>
    %114 = vector.broadcast %113 : vector<1x128xf32> to vector<8x128xf32>
    %115 = arith.addf %112, %114 : vector<8x128xf32>
    %116 = arith.mulf %102, %115 : vector<8x128xf32>
    %117 = arith.addf %111, %116 : vector<8x128xf32>
    %118 = math.tanh %117 : vector<8x128xf32>
    %cst_46 = arith.constant 1.000000e+00 : f32
    %119 = vector.broadcast %cst_46 : f32 to vector<8x128xf32>
    %120 = arith.subf %119, %110 : vector<8x128xf32>
    %121 = arith.mulf %120, %118 : vector<8x128xf32>
    %122 = arith.mulf %110, %83 : vector<8x128xf32>
    %123 = arith.addf %121, %122 : vector<8x128xf32>
    %c3_i32 = arith.constant 3 : i32
    %124 = arith.index_cast %c3_i32 : i32 to index
    %c0_47 = arith.constant 0 : index
    %c0_48 = arith.constant 0 : index
    %125 = vector.load %arg1[%124, %c0_47, %c0_48] : memref<8x8x128xbf16, #tpu.memory_space<vmem>>, vector<1x8x128xbf16>
    %126 = vector.shape_cast %125 : vector<1x8x128xbf16> to vector<8x128xbf16>
    %c0_49 = arith.constant 0 : index
    %c0_50 = arith.constant 0 : index
    %127 = vector.load %arg8[%c0_49, %c0_50] : memref<128x384xbf16, #tpu.memory_space<vmem>>, vector<128x384xbf16>
    %cst_51 = arith.constant dense<0.000000e+00> : vector<8x384xf32>
    %128 = tpu.matmul %126, %127, %cst_51 {dimension_numbers = #tpu.dot_dimension_numbers<[1], [0], [0], [1], [0, 0, 1, 1], [], []>} : vector<8x128xbf16>, vector<128x384xbf16>, vector<8x384xf32> -> vector<8x384xf32>
    %c0_52 = arith.constant 0 : index
    %c0_53 = arith.constant 0 : index
    %129 = vector.load %arg3[%c0_52, %c0_53] : memref<1x384xf32, #tpu.memory_space<vmem>>, vector<1x384xf32>
    %130 = vector.broadcast %129 : vector<1x384xf32> to vector<8x384xf32>
    %131 = arith.addf %128, %130 : vector<8x384xf32>
    %132 = arith.truncf %123 : vector<8x128xf32> to vector<8x128xbf16>
    %c0_54 = arith.constant 0 : index
    %c0_55 = arith.constant 0 : index
    %133 = vector.load %arg9[%c0_54, %c0_55] : memref<128x384xbf16, #tpu.memory_space<vmem>>, vector<128x384xbf16>
    %cst_56 = arith.constant dense<0.000000e+00> : vector<8x384xf32>
    %134 = tpu.matmul %132, %133, %cst_56 {dimension_numbers = #tpu.dot_dimension_numbers<[1], [0], [0], [1], [0, 0, 1, 1], [], []>} : vector<8x128xbf16>, vector<128x384xbf16>, vector<8x384xf32> -> vector<8x384xf32>
    %135 = vector.extract_strided_slice %131 {offsets = [0, 0], sizes = [8, 128], strides = [1, 1]} : vector<8x384xf32> to vector<8x128xf32>
    %136 = vector.extract_strided_slice %134 {offsets = [0, 0], sizes = [8, 128], strides = [1, 1]} : vector<8x384xf32> to vector<8x128xf32>
    %137 = arith.addf %135, %136 : vector<8x128xf32>
    %138 = arith.negf %137 : vector<8x128xf32>
    %139 = math.exp %138 : vector<8x128xf32>
    %cst_57 = arith.constant 1.000000e+00 : f32
    %140 = vector.broadcast %cst_57 : f32 to vector<8x128xf32>
    %141 = arith.addf %140, %139 : vector<8x128xf32>
    %142 = arith.divf %140, %141 : vector<8x128xf32>
    %143 = vector.extract_strided_slice %131 {offsets = [0, 128], sizes = [8, 128], strides = [1, 1]} : vector<8x384xf32> to vector<8x128xf32>
    %144 = vector.extract_strided_slice %134 {offsets = [0, 128], sizes = [8, 128], strides = [1, 1]} : vector<8x384xf32> to vector<8x128xf32>
    %145 = arith.addf %143, %144 : vector<8x128xf32>
    %146 = arith.negf %145 : vector<8x128xf32>
    %147 = math.exp %146 : vector<8x128xf32>
    %cst_58 = arith.constant 1.000000e+00 : f32
    %148 = vector.broadcast %cst_58 : f32 to vector<8x128xf32>
    %149 = arith.addf %148, %147 : vector<8x128xf32>
    %150 = arith.divf %148, %149 : vector<8x128xf32>
    %151 = vector.extract_strided_slice %131 {offsets = [0, 256], sizes = [8, 128], strides = [1, 1]} : vector<8x384xf32> to vector<8x128xf32>
    %152 = vector.extract_strided_slice %134 {offsets = [0, 256], sizes = [8, 128], strides = [1, 1]} : vector<8x384xf32> to vector<8x128xf32>
    %c0_59 = arith.constant 0 : index
    %c0_60 = arith.constant 0 : index
    %153 = vector.load %arg4[%c0_59, %c0_60] : memref<1x128xf32, #tpu.memory_space<vmem>>, vector<1x128xf32>
    %154 = vector.broadcast %153 : vector<1x128xf32> to vector<8x128xf32>
    %155 = arith.addf %152, %154 : vector<8x128xf32>
    %156 = arith.mulf %142, %155 : vector<8x128xf32>
    %157 = arith.addf %151, %156 : vector<8x128xf32>
    %158 = math.tanh %157 : vector<8x128xf32>
    %cst_61 = arith.constant 1.000000e+00 : f32
    %159 = vector.broadcast %cst_61 : f32 to vector<8x128xf32>
    %160 = arith.subf %159, %150 : vector<8x128xf32>
    %161 = arith.mulf %160, %158 : vector<8x128xf32>
    %162 = arith.mulf %150, %123 : vector<8x128xf32>
    %163 = arith.addf %161, %162 : vector<8x128xf32>
    %c4_i32 = arith.constant 4 : i32
    %164 = arith.index_cast %c4_i32 : i32 to index
    %c0_62 = arith.constant 0 : index
    %c0_63 = arith.constant 0 : index
    %165 = vector.load %arg1[%164, %c0_62, %c0_63] : memref<8x8x128xbf16, #tpu.memory_space<vmem>>, vector<1x8x128xbf16>
    %166 = vector.shape_cast %165 : vector<1x8x128xbf16> to vector<8x128xbf16>
    %c0_64 = arith.constant 0 : index
    %c0_65 = arith.constant 0 : index
    %167 = vector.load %arg8[%c0_64, %c0_65] : memref<128x384xbf16, #tpu.memory_space<vmem>>, vector<128x384xbf16>
    %cst_66 = arith.constant dense<0.000000e+00> : vector<8x384xf32>
    %168 = tpu.matmul %166, %167, %cst_66 {dimension_numbers = #tpu.dot_dimension_numbers<[1], [0], [0], [1], [0, 0, 1, 1], [], []>} : vector<8x128xbf16>, vector<128x384xbf16>, vector<8x384xf32> -> vector<8x384xf32>
    %c0_67 = arith.constant 0 : index
    %c0_68 = arith.constant 0 : index
    %169 = vector.load %arg3[%c0_67, %c0_68] : memref<1x384xf32, #tpu.memory_space<vmem>>, vector<1x384xf32>
    %170 = vector.broadcast %169 : vector<1x384xf32> to vector<8x384xf32>
    %171 = arith.addf %168, %170 : vector<8x384xf32>
    %172 = arith.truncf %163 : vector<8x128xf32> to vector<8x128xbf16>
    %c0_69 = arith.constant 0 : index
    %c0_70 = arith.constant 0 : index
    %173 = vector.load %arg9[%c0_69, %c0_70] : memref<128x384xbf16, #tpu.memory_space<vmem>>, vector<128x384xbf16>
    %cst_71 = arith.constant dense<0.000000e+00> : vector<8x384xf32>
    %174 = tpu.matmul %172, %173, %cst_71 {dimension_numbers = #tpu.dot_dimension_numbers<[1], [0], [0], [1], [0, 0, 1, 1], [], []>} : vector<8x128xbf16>, vector<128x384xbf16>, vector<8x384xf32> -> vector<8x384xf32>
    %175 = vector.extract_strided_slice %171 {offsets = [0, 0], sizes = [8, 128], strides = [1, 1]} : vector<8x384xf32> to vector<8x128xf32>
    %176 = vector.extract_strided_slice %174 {offsets = [0, 0], sizes = [8, 128], strides = [1, 1]} : vector<8x384xf32> to vector<8x128xf32>
    %177 = arith.addf %175, %176 : vector<8x128xf32>
    %178 = arith.negf %177 : vector<8x128xf32>
    %179 = math.exp %178 : vector<8x128xf32>
    %cst_72 = arith.constant 1.000000e+00 : f32
    %180 = vector.broadcast %cst_72 : f32 to vector<8x128xf32>
    %181 = arith.addf %180, %179 : vector<8x128xf32>
    %182 = arith.divf %180, %181 : vector<8x128xf32>
    %183 = vector.extract_strided_slice %171 {offsets = [0, 128], sizes = [8, 128], strides = [1, 1]} : vector<8x384xf32> to vector<8x128xf32>
    %184 = vector.extract_strided_slice %174 {offsets = [0, 128], sizes = [8, 128], strides = [1, 1]} : vector<8x384xf32> to vector<8x128xf32>
    %185 = arith.addf %183, %184 : vector<8x128xf32>
    %186 = arith.negf %185 : vector<8x128xf32>
    %187 = math.exp %186 : vector<8x128xf32>
    %cst_73 = arith.constant 1.000000e+00 : f32
    %188 = vector.broadcast %cst_73 : f32 to vector<8x128xf32>
    %189 = arith.addf %188, %187 : vector<8x128xf32>
    %190 = arith.divf %188, %189 : vector<8x128xf32>
    %191 = vector.extract_strided_slice %171 {offsets = [0, 256], sizes = [8, 128], strides = [1, 1]} : vector<8x384xf32> to vector<8x128xf32>
    %192 = vector.extract_strided_slice %174 {offsets = [0, 256], sizes = [8, 128], strides = [1, 1]} : vector<8x384xf32> to vector<8x128xf32>
    %c0_74 = arith.constant 0 : index
    %c0_75 = arith.constant 0 : index
    %193 = vector.load %arg4[%c0_74, %c0_75] : memref<1x128xf32, #tpu.memory_space<vmem>>, vector<1x128xf32>
    %194 = vector.broadcast %193 : vector<1x128xf32> to vector<8x128xf32>
    %195 = arith.addf %192, %194 : vector<8x128xf32>
    %196 = arith.mulf %182, %195 : vector<8x128xf32>
    %197 = arith.addf %191, %196 : vector<8x128xf32>
    %198 = math.tanh %197 : vector<8x128xf32>
    %cst_76 = arith.constant 1.000000e+00 : f32
    %199 = vector.broadcast %cst_76 : f32 to vector<8x128xf32>
    %200 = arith.subf %199, %190 : vector<8x128xf32>
    %201 = arith.mulf %200, %198 : vector<8x128xf32>
    %202 = arith.mulf %190, %163 : vector<8x128xf32>
    %203 = arith.addf %201, %202 : vector<8x128xf32>
    %c5_i32 = arith.constant 5 : i32
    %204 = arith.index_cast %c5_i32 : i32 to index
    %c0_77 = arith.constant 0 : index
    %c0_78 = arith.constant 0 : index
    %205 = vector.load %arg1[%204, %c0_77, %c0_78] : memref<8x8x128xbf16, #tpu.memory_space<vmem>>, vector<1x8x128xbf16>
    %206 = vector.shape_cast %205 : vector<1x8x128xbf16> to vector<8x128xbf16>
    %c0_79 = arith.constant 0 : index
    %c0_80 = arith.constant 0 : index
    %207 = vector.load %arg8[%c0_79, %c0_80] : memref<128x384xbf16, #tpu.memory_space<vmem>>, vector<128x384xbf16>
    %cst_81 = arith.constant dense<0.000000e+00> : vector<8x384xf32>
    %208 = tpu.matmul %206, %207, %cst_81 {dimension_numbers = #tpu.dot_dimension_numbers<[1], [0], [0], [1], [0, 0, 1, 1], [], []>} : vector<8x128xbf16>, vector<128x384xbf16>, vector<8x384xf32> -> vector<8x384xf32>
    %c0_82 = arith.constant 0 : index
    %c0_83 = arith.constant 0 : index
    %209 = vector.load %arg3[%c0_82, %c0_83] : memref<1x384xf32, #tpu.memory_space<vmem>>, vector<1x384xf32>
    %210 = vector.broadcast %209 : vector<1x384xf32> to vector<8x384xf32>
    %211 = arith.addf %208, %210 : vector<8x384xf32>
    %212 = arith.truncf %203 : vector<8x128xf32> to vector<8x128xbf16>
    %c0_84 = arith.constant 0 : index
    %c0_85 = arith.constant 0 : index
    %213 = vector.load %arg9[%c0_84, %c0_85] : memref<128x384xbf16, #tpu.memory_space<vmem>>, vector<128x384xbf16>
    %cst_86 = arith.constant dense<0.000000e+00> : vector<8x384xf32>
    %214 = tpu.matmul %212, %213, %cst_86 {dimension_numbers = #tpu.dot_dimension_numbers<[1], [0], [0], [1], [0, 0, 1, 1], [], []>} : vector<8x128xbf16>, vector<128x384xbf16>, vector<8x384xf32> -> vector<8x384xf32>
    %215 = vector.extract_strided_slice %211 {offsets = [0, 0], sizes = [8, 128], strides = [1, 1]} : vector<8x384xf32> to vector<8x128xf32>
    %216 = vector.extract_strided_slice %214 {offsets = [0, 0], sizes = [8, 128], strides = [1, 1]} : vector<8x384xf32> to vector<8x128xf32>
    %217 = arith.addf %215, %216 : vector<8x128xf32>
    %218 = arith.negf %217 : vector<8x128xf32>
    %219 = math.exp %218 : vector<8x128xf32>
    %cst_87 = arith.constant 1.000000e+00 : f32
    %220 = vector.broadcast %cst_87 : f32 to vector<8x128xf32>
    %221 = arith.addf %220, %219 : vector<8x128xf32>
    %222 = arith.divf %220, %221 : vector<8x128xf32>
    %223 = vector.extract_strided_slice %211 {offsets = [0, 128], sizes = [8, 128], strides = [1, 1]} : vector<8x384xf32> to vector<8x128xf32>
    %224 = vector.extract_strided_slice %214 {offsets = [0, 128], sizes = [8, 128], strides = [1, 1]} : vector<8x384xf32> to vector<8x128xf32>
    %225 = arith.addf %223, %224 : vector<8x128xf32>
    %226 = arith.negf %225 : vector<8x128xf32>
    %227 = math.exp %226 : vector<8x128xf32>
    %cst_88 = arith.constant 1.000000e+00 : f32
    %228 = vector.broadcast %cst_88 : f32 to vector<8x128xf32>
    %229 = arith.addf %228, %227 : vector<8x128xf32>
    %230 = arith.divf %228, %229 : vector<8x128xf32>
    %231 = vector.extract_strided_slice %211 {offsets = [0, 256], sizes = [8, 128], strides = [1, 1]} : vector<8x384xf32> to vector<8x128xf32>
    %232 = vector.extract_strided_slice %214 {offsets = [0, 256], sizes = [8, 128], strides = [1, 1]} : vector<8x384xf32> to vector<8x128xf32>
    %c0_89 = arith.constant 0 : index
    %c0_90 = arith.constant 0 : index
    %233 = vector.load %arg4[%c0_89, %c0_90] : memref<1x128xf32, #tpu.memory_space<vmem>>, vector<1x128xf32>
    %234 = vector.broadcast %233 : vector<1x128xf32> to vector<8x128xf32>
    %235 = arith.addf %232, %234 : vector<8x128xf32>
    %236 = arith.mulf %222, %235 : vector<8x128xf32>
    %237 = arith.addf %231, %236 : vector<8x128xf32>
    %238 = math.tanh %237 : vector<8x128xf32>
    %cst_91 = arith.constant 1.000000e+00 : f32
    %239 = vector.broadcast %cst_91 : f32 to vector<8x128xf32>
    %240 = arith.subf %239, %230 : vector<8x128xf32>
    %241 = arith.mulf %240, %238 : vector<8x128xf32>
    %242 = arith.mulf %230, %203 : vector<8x128xf32>
    %243 = arith.addf %241, %242 : vector<8x128xf32>
    %c6_i32 = arith.constant 6 : i32
    %244 = arith.index_cast %c6_i32 : i32 to index
    %c0_92 = arith.constant 0 : index
    %c0_93 = arith.constant 0 : index
    %245 = vector.load %arg1[%244, %c0_92, %c0_93] : memref<8x8x128xbf16, #tpu.memory_space<vmem>>, vector<1x8x128xbf16>
    %246 = vector.shape_cast %245 : vector<1x8x128xbf16> to vector<8x128xbf16>
    %c0_94 = arith.constant 0 : index
    %c0_95 = arith.constant 0 : index
    %247 = vector.load %arg8[%c0_94, %c0_95] : memref<128x384xbf16, #tpu.memory_space<vmem>>, vector<128x384xbf16>
    %cst_96 = arith.constant dense<0.000000e+00> : vector<8x384xf32>
    %248 = tpu.matmul %246, %247, %cst_96 {dimension_numbers = #tpu.dot_dimension_numbers<[1], [0], [0], [1], [0, 0, 1, 1], [], []>} : vector<8x128xbf16>, vector<128x384xbf16>, vector<8x384xf32> -> vector<8x384xf32>
    %c0_97 = arith.constant 0 : index
    %c0_98 = arith.constant 0 : index
    %249 = vector.load %arg3[%c0_97, %c0_98] : memref<1x384xf32, #tpu.memory_space<vmem>>, vector<1x384xf32>
    %250 = vector.broadcast %249 : vector<1x384xf32> to vector<8x384xf32>
    %251 = arith.addf %248, %250 : vector<8x384xf32>
    %252 = arith.truncf %243 : vector<8x128xf32> to vector<8x128xbf16>
    %c0_99 = arith.constant 0 : index
    %c0_100 = arith.constant 0 : index
    %253 = vector.load %arg9[%c0_99, %c0_100] : memref<128x384xbf16, #tpu.memory_space<vmem>>, vector<128x384xbf16>
    %cst_101 = arith.constant dense<0.000000e+00> : vector<8x384xf32>
    %254 = tpu.matmul %252, %253, %cst_101 {dimension_numbers = #tpu.dot_dimension_numbers<[1], [0], [0], [1], [0, 0, 1, 1], [], []>} : vector<8x128xbf16>, vector<128x384xbf16>, vector<8x384xf32> -> vector<8x384xf32>
    %255 = vector.extract_strided_slice %251 {offsets = [0, 0], sizes = [8, 128], strides = [1, 1]} : vector<8x384xf32> to vector<8x128xf32>
    %256 = vector.extract_strided_slice %254 {offsets = [0, 0], sizes = [8, 128], strides = [1, 1]} : vector<8x384xf32> to vector<8x128xf32>
    %257 = arith.addf %255, %256 : vector<8x128xf32>
    %258 = arith.negf %257 : vector<8x128xf32>
    %259 = math.exp %258 : vector<8x128xf32>
    %cst_102 = arith.constant 1.000000e+00 : f32
    %260 = vector.broadcast %cst_102 : f32 to vector<8x128xf32>
    %261 = arith.addf %260, %259 : vector<8x128xf32>
    %262 = arith.divf %260, %261 : vector<8x128xf32>
    %263 = vector.extract_strided_slice %251 {offsets = [0, 128], sizes = [8, 128], strides = [1, 1]} : vector<8x384xf32> to vector<8x128xf32>
    %264 = vector.extract_strided_slice %254 {offsets = [0, 128], sizes = [8, 128], strides = [1, 1]} : vector<8x384xf32> to vector<8x128xf32>
    %265 = arith.addf %263, %264 : vector<8x128xf32>
    %266 = arith.negf %265 : vector<8x128xf32>
    %267 = math.exp %266 : vector<8x128xf32>
    %cst_103 = arith.constant 1.000000e+00 : f32
    %268 = vector.broadcast %cst_103 : f32 to vector<8x128xf32>
    %269 = arith.addf %268, %267 : vector<8x128xf32>
    %270 = arith.divf %268, %269 : vector<8x128xf32>
    %271 = vector.extract_strided_slice %251 {offsets = [0, 256], sizes = [8, 128], strides = [1, 1]} : vector<8x384xf32> to vector<8x128xf32>
    %272 = vector.extract_strided_slice %254 {offsets = [0, 256], sizes = [8, 128], strides = [1, 1]} : vector<8x384xf32> to vector<8x128xf32>
    %c0_104 = arith.constant 0 : index
    %c0_105 = arith.constant 0 : index
    %273 = vector.load %arg4[%c0_104, %c0_105] : memref<1x128xf32, #tpu.memory_space<vmem>>, vector<1x128xf32>
    %274 = vector.broadcast %273 : vector<1x128xf32> to vector<8x128xf32>
    %275 = arith.addf %272, %274 : vector<8x128xf32>
    %276 = arith.mulf %262, %275 : vector<8x128xf32>
    %277 = arith.addf %271, %276 : vector<8x128xf32>
    %278 = math.tanh %277 : vector<8x128xf32>
    %cst_106 = arith.constant 1.000000e+00 : f32
    %279 = vector.broadcast %cst_106 : f32 to vector<8x128xf32>
    %280 = arith.subf %279, %270 : vector<8x128xf32>
    %281 = arith.mulf %280, %278 : vector<8x128xf32>
    %282 = arith.mulf %270, %243 : vector<8x128xf32>
    %283 = arith.addf %281, %282 : vector<8x128xf32>
    %c7_i32 = arith.constant 7 : i32
    %284 = arith.index_cast %c7_i32 : i32 to index
    %c0_107 = arith.constant 0 : index
    %c0_108 = arith.constant 0 : index
    %285 = vector.load %arg1[%284, %c0_107, %c0_108] : memref<8x8x128xbf16, #tpu.memory_space<vmem>>, vector<1x8x128xbf16>
    %286 = vector.shape_cast %285 : vector<1x8x128xbf16> to vector<8x128xbf16>
    %c0_109 = arith.constant 0 : index
    %c0_110 = arith.constant 0 : index
    %287 = vector.load %arg8[%c0_109, %c0_110] : memref<128x384xbf16, #tpu.memory_space<vmem>>, vector<128x384xbf16>
    %cst_111 = arith.constant dense<0.000000e+00> : vector<8x384xf32>
    %288 = tpu.matmul %286, %287, %cst_111 {dimension_numbers = #tpu.dot_dimension_numbers<[1], [0], [0], [1], [0, 0, 1, 1], [], []>} : vector<8x128xbf16>, vector<128x384xbf16>, vector<8x384xf32> -> vector<8x384xf32>
    %c0_112 = arith.constant 0 : index
    %c0_113 = arith.constant 0 : index
    %289 = vector.load %arg3[%c0_112, %c0_113] : memref<1x384xf32, #tpu.memory_space<vmem>>, vector<1x384xf32>
    %290 = vector.broadcast %289 : vector<1x384xf32> to vector<8x384xf32>
    %291 = arith.addf %288, %290 : vector<8x384xf32>
    %292 = arith.truncf %283 : vector<8x128xf32> to vector<8x128xbf16>
    %c0_114 = arith.constant 0 : index
    %c0_115 = arith.constant 0 : index
    %293 = vector.load %arg9[%c0_114, %c0_115] : memref<128x384xbf16, #tpu.memory_space<vmem>>, vector<128x384xbf16>
    %cst_116 = arith.constant dense<0.000000e+00> : vector<8x384xf32>
    %294 = tpu.matmul %292, %293, %cst_116 {dimension_numbers = #tpu.dot_dimension_numbers<[1], [0], [0], [1], [0, 0, 1, 1], [], []>} : vector<8x128xbf16>, vector<128x384xbf16>, vector<8x384xf32> -> vector<8x384xf32>
    %295 = vector.extract_strided_slice %291 {offsets = [0, 0], sizes = [8, 128], strides = [1, 1]} : vector<8x384xf32> to vector<8x128xf32>
    %296 = vector.extract_strided_slice %294 {offsets = [0, 0], sizes = [8, 128], strides = [1, 1]} : vector<8x384xf32> to vector<8x128xf32>
    %297 = arith.addf %295, %296 : vector<8x128xf32>
    %298 = arith.negf %297 : vector<8x128xf32>
    %299 = math.exp %298 : vector<8x128xf32>
    %cst_117 = arith.constant 1.000000e+00 : f32
    %300 = vector.broadcast %cst_117 : f32 to vector<8x128xf32>
    %301 = arith.addf %300, %299 : vector<8x128xf32>
    %302 = arith.divf %300, %301 : vector<8x128xf32>
    %303 = vector.extract_strided_slice %291 {offsets = [0, 128], sizes = [8, 128], strides = [1, 1]} : vector<8x384xf32> to vector<8x128xf32>
    %304 = vector.extract_strided_slice %294 {offsets = [0, 128], sizes = [8, 128], strides = [1, 1]} : vector<8x384xf32> to vector<8x128xf32>
    %305 = arith.addf %303, %304 : vector<8x128xf32>
    %306 = arith.negf %305 : vector<8x128xf32>
    %307 = math.exp %306 : vector<8x128xf32>
    %cst_118 = arith.constant 1.000000e+00 : f32
    %308 = vector.broadcast %cst_118 : f32 to vector<8x128xf32>
    %309 = arith.addf %308, %307 : vector<8x128xf32>
    %310 = arith.divf %308, %309 : vector<8x128xf32>
    %311 = vector.extract_strided_slice %291 {offsets = [0, 256], sizes = [8, 128], strides = [1, 1]} : vector<8x384xf32> to vector<8x128xf32>
    %312 = vector.extract_strided_slice %294 {offsets = [0, 256], sizes = [8, 128], strides = [1, 1]} : vector<8x384xf32> to vector<8x128xf32>
    %c0_119 = arith.constant 0 : index
    %c0_120 = arith.constant 0 : index
    %313 = vector.load %arg4[%c0_119, %c0_120] : memref<1x128xf32, #tpu.memory_space<vmem>>, vector<1x128xf32>
    %314 = vector.broadcast %313 : vector<1x128xf32> to vector<8x128xf32>
    %315 = arith.addf %312, %314 : vector<8x128xf32>
    %316 = arith.mulf %302, %315 : vector<8x128xf32>
    %317 = arith.addf %311, %316 : vector<8x128xf32>
    %318 = math.tanh %317 : vector<8x128xf32>
    %cst_121 = arith.constant 1.000000e+00 : f32
    %319 = vector.broadcast %cst_121 : f32 to vector<8x128xf32>
    %320 = arith.subf %319, %310 : vector<8x128xf32>
    %321 = arith.mulf %320, %318 : vector<8x128xf32>
    %322 = arith.mulf %310, %283 : vector<8x128xf32>
    %323 = arith.addf %321, %322 : vector<8x128xf32>
    %c8_i32 = arith.constant 8 : i32
    %c0_122 = arith.constant 0 : index
    %c0_123 = arith.constant 0 : index
    %324 = vector.load %arg10[%c0_122, %c0_123] : memref<8x128xf32, #tpu.memory_space<vmem>>, vector<8x128xf32>
    tpu.vector_store %arg10[%c0_122, %c0_123], %323 {strides = array<i32>} : memref<8x128xf32, #tpu.memory_space<vmem>>, vector<8x128xf32>,
    %c0_124 = arith.constant 0 : index
    %c0_125 = arith.constant 0 : index
    %325 = vector.load %arg7[%c0_124, %c0_125] : memref<8x128xf32, #tpu.memory_space<vmem>>, vector<8x128xf32>
    tpu.vector_store %arg7[%c0_124, %c0_125], %323 {strides = array<i32>} : memref<8x128xf32, #tpu.memory_space<vmem>>, vector<8x128xf32>,
    return
  }
  func.func @transform_0(%arg0: i32) -> (i32, i32, i32) {
    %c0_i32 = arith.constant 0 : i32
    %c0_i32_0 = arith.constant 0 : i32
    %c0_i32_1 = arith.constant 0 : i32
    return %arg0, %c0_i32, %c0_i32_0 : i32, i32, i32
  }
  func.func @transform_1(%arg0: i32) -> (i32, i32) {
    %c0_i32 = arith.constant 0 : i32
    %c0_i32_0 = arith.constant 0 : i32
    %c0_i32_1 = arith.constant 0 : i32
    return %c0_i32, %c0_i32_0 : i32, i32
  }
  func.func @transform_2(%arg0: i32) -> (i32, i32) {
    %c0_i32 = arith.constant 0 : i32
    %c0_i32_0 = arith.constant 0 : i32
    %c0_i32_1 = arith.constant 0 : i32
    return %c0_i32, %c0_i32_0 : i32, i32
  }
  func.func @transform_3(%arg0: i32) -> (i32, i32) {
    %c0_i32 = arith.constant 0 : i32
    %c0_i32_0 = arith.constant 0 : i32
    %c0_i32_1 = arith.constant 0 : i32
    return %c0_i32, %c0_i32_0 : i32, i32
  }
  func.func @transform_6(%arg0: i32) -> (i32, i32) {
    %c0_i32 = arith.constant 0 : i32
    %c0_i32_0 = arith.constant 0 : i32
    %c0_i32_1 = arith.constant 0 : i32
    return %c0_i32, %c0_i32_0 : i32, i32
  }
}

</mosaic_0001>

<llo_original>
// kernel: decoder_forward.4
$region0: #{decoder_forward.4}
  #allocation0 [shape = 'u32[]', space=smem, size = 0x4, offset = 0x4, fixed_abs, tag = 'smem constant byte address 0x4 - core index']
  #allocation1 [shape = 'u32[72,128]{1,0:T(1,128)}', space=vmem, size = 0x9000, scoped, tag = 'internal scratch']
  %s0 = inlined_call_operand.vmem [shape: f32[8,128], index: 0, kind: input, shape index: {}]
  %s1 = inlined_call_operand.vmem [shape: bf16[128,128], index: 1, kind: input, shape index: {}]
  %s2 = inlined_call_operand.vmem [shape: f32[1,128], index: 2, kind: input, shape index: {}]
  %s3 = inlined_call_operand.vmem [shape: f32[8,128], index: 3, kind: output, shape index: {}]
  %s4 = sld [smem:[#allocation0]]
  $region22: #{decoder_forward.4} parent=0
    _
  %s6 = ssub.s32 1, %s4
  %s7 = scalar_select 0, %s6, %s4
  // Predicated region
  $region2: #{decoder_forward.4} parent=0 // pred_check
    _
  $region3: #{decoder_forward.4} parent=0 // pred_check_branch
    %9 = sbr.rel (0) target = $region5
  $region4: #{decoder_forward.4} parent=0 // pred_region
    _
  $region5: #{decoder_forward.4} parent=0 // pred_fallthru
    _
  // Predicated region
  $region6: #{decoder_forward.4} parent=0 // pred_check
    _
  $region7: #{decoder_forward.4} parent=0 // pred_check_branch
    %11 = sbr.rel (0) target = $region9
  $region8: #{decoder_forward.4} parent=0 // pred_region
    _
  $region9: #{decoder_forward.4} parent=0 // pred_fallthru
    _
  // Predicated region
  $region10: #{decoder_forward.4} parent=0 // pred_check
    _
  $region11: #{decoder_forward.4} parent=0 // pred_check_branch
    %13 = sbr.rel (0) target = $region13
  $region12: #{decoder_forward.4} parent=0 // pred_region
    _
  $region13: #{decoder_forward.4} parent=0 // pred_fallthru
    _
  %v14 = vld [vmem:[%s0] sm:$0xff]
  %v15 = vpack.c.bf16 %v14, %v14
  %v16 = vld [vmem:[%s1] sm:$0xf]
  %v17 = vld [vmem:[%s1 + $0x4] sm:$0xf]
  %v18 = vld [vmem:[%s1 + $0x8] sm:$0xf]
  %v19 = vld [vmem:[%s1 + $0xc] sm:$0xf]
  %v20 = vld [vmem:[%s1 + $0x10] sm:$0xf]
  %v21 = vld [vmem:[%s1 + $0x14] sm:$0xf]
  %v22 = vld [vmem:[%s1 + $0x18] sm:$0xf]
  %v23 = vld [vmem:[%s1 + $0x1c] sm:$0xf]
  %v24 = vld [vmem:[%s1 + $0x20] sm:$0xf]
  %v25 = vld [vmem:[%s1 + $0x24] sm:$0xf]
  %v26 = vld [vmem:[%s1 + $0x28] sm:$0xf]
  %v27 = vld [vmem:[%s1 + $0x2c] sm:$0xf]
  %v28 = vld [vmem:[%s1 + $0x30] sm:$0xf]
  %v29 = vld [vmem:[%s1 + $0x34] sm:$0xf]
  %v30 = vld [vmem:[%s1 + $0x38] sm:$0xf]
  %v31 = vld [vmem:[%s1 + $0x3c] sm:$0xf]
  %v32 = vld [vmem:[%s2] sm:$0x1]
  %v34 = vperm.slane %v32, 0
  %v52 = vunpack.c.l.b16 %v16
  %v53 = vunpack.c.l.b16 %v17
  %v54 = vunpack.c.l.b16 %v18
  %v55 = vunpack.c.l.b16 %v19
  %v56 = vunpack.c.l.b16 %v20
  %v57 = vunpack.c.l.b16 %v21
  %v58 = vunpack.c.l.b16 %v22
  %v59 = vunpack.c.l.b16 %v23
  %v60 = vunpack.c.l.b16 %v24
  %v61 = vunpack.c.l.b16 %v25
  %v62 = vunpack.c.l.b16 %v26
  %v63 = vunpack.c.l.b16 %v27
  %v64 = vunpack.c.l.b16 %v28
  %v65 = vunpack.c.l.b16 %v29
  %v66 = vunpack.c.l.b16 %v30
  %v67 = vunpack.c.l.b16 %v31
  %v68 = vpack.c.b16 %v53, %v52
  %v69 = vpack.c.b16 %v55, %v54
  %v70 = vpack.c.b16 %v57, %v56
  %v71 = vpack.c.b16 %v59, %v58
  %v72 = vpack.c.b16 %v61, %v60
  %v73 = vpack.c.b16 %v63, %v62
  %v74 = vpack.c.b16 %v65, %v64
  %v75 = vpack.c.b16 %v67, %v66
  %84 = vmatpush.bf16.msra.mxu0 %v75
  %85 = vmatpush.bf16.msra.mxu0 %v74
  %86 = vmatpush.bf16.msra.mxu0 %v73
  %87 = vmatpush.bf16.msra.mxu0 %v72
  %88 = vmatpush.bf16.msra.mxu0 %v71
  %89 = vmatpush.bf16.msra.mxu0 %v70
  %90 = vmatpush.bf16.msra.mxu0 %v69
  %91 = vmatpush.bf16.msra.mxu0 %v68
  %92 = vmatmul.bf16.gmra.mxu0 %v15
  %v93 = vpop.f32.mrf.mxu0
  %v94 = vadd.f32 %v34, %v93
  %v95 = vpop.f32.mrf.mxu0
  %96 = vdwg.mxu0
  %97 = vst [vmem:[%s3] sm:$0xff] %v94
  // Predicated region
  $region14: #{decoder_forward.4} parent=0 // pred_check
    _
  $region15: #{decoder_forward.4} parent=0 // pred_check_branch
    %99 = sbr.rel (0) target = $region17
  $region16: #{decoder_forward.4} parent=0 // pred_region
    _
  $region17: #{decoder_forward.4} parent=0 // pred_fallthru
    _
  // Predicated region
  $region18: #{decoder_forward.4} parent=0 // pred_check
    _
  $region19: #{decoder_forward.4} parent=0 // pred_check_branch
    %101 = sbr.rel (0) target = $region21
  $region20: #{decoder_forward.4} parent=0 // pred_region
    _
  $region21: #{decoder_forward.4} parent=0 // pred_fallthru
    _

// kernel: decoder_forward.5
$region0: #{decoder_forward.5}
  #allocation0 [shape = 'u32[]', space=smem, size = 0x4, offset = 0x4, fixed_abs, tag = 'smem constant byte address 0x4 - core index']
  #allocation1 [shape = 'u32[72,128]{1,0:T(1,128)}', space=vmem, size = 0x9000, scoped, tag = 'internal scratch']
  %s0 = inlined_call_operand.vmem [shape: f32[8,128], index: 0, kind: input, shape index: {}]
  %s1 = inlined_call_operand.vmem [shape: f32[8,128], index: 1, kind: output, shape index: {}]
  %s2 = sld [smem:[#allocation0]]
  $region14: #{decoder_forward.5} parent=0
    _
  %s4 = ssub.s32 1, %s2
  %s5 = scalar_select 0, %s4, %s2
  // Predicated region
  $region2: #{decoder_forward.5} parent=0 // pred_check
    _
  $region3: #{decoder_forward.5} parent=0 // pred_check_branch
    %7 = sbr.rel (0) target = $region5
  $region4: #{decoder_forward.5} parent=0 // pred_region
    _
  $region5: #{decoder_forward.5} parent=0 // pred_fallthru
    _
  %v8 = vld [vmem:[%s0] sm:$0xff]
  %9 = vmax.xlane.f32.xlu0 %v8
  %v10 = vpop.xlane.xlu0 %9
  %v11 = vsub.f32 %v8, %v10
  %v12 = vmul.f32 %v11, 1.442695
  %v13 = vpow.pop %v12
  %14 = vadd.xlane.f32.xlu0 %v13
  %v15 = vpop.xlane.xlu0 %14
  %v16 = vlog2.pop %v15
  %v17 = vmul.f32 %v16, 0.6931472
  %v18 = vsub.f32 %v11, %v17
  %19 = vst [vmem:[%s1] sm:$0xff] %v18
  // Predicated region
  $region6: #{decoder_forward.5} parent=0 // pred_check
    _
  $region7: #{decoder_forward.5} parent=0 // pred_check_branch
    %21 = sbr.rel (0) target = $region9
  $region8: #{decoder_forward.5} parent=0 // pred_region
    _
  $region9: #{decoder_forward.5} parent=0 // pred_fallthru
    _
  // Predicated region
  $region10: #{decoder_forward.5} parent=0 // pred_check
    _
  $region11: #{decoder_forward.5} parent=0 // pred_check_branch
    %23 = sbr.rel (0) target = $region13
  $region12: #{decoder_forward.5} parent=0 // pred_region
    _
  $region13: #{decoder_forward.5} parent=0 // pred_fallthru
    _

// kernel: decoder_forward.3
$region0: #{decoder_forward.3}
  #allocation0 [shape = 'u32[]', space=smem, size = 0x4, offset = 0x4, fixed_abs, tag = 'smem constant byte address 0x4 - core index']
  #allocation1 [shape = 'u32[72,128]{1,0:T(1,128)}', space=vmem, size = 0x9000, scoped, tag = 'internal scratch']
  #allocation2 [shape = 'bf16[128,384]{1,0:T(8,128)(2,1)}', space=vmem, size = 0x18000, scoped, tag = 'scratch operand']
  #allocation3 [shape = 'bf16[128,384]{1,0:T(8,128)(2,1)}', space=vmem, size = 0x18000, scoped, tag = 'scratch operand']
  #allocation4 [shape = 'f32[8,128]{1,0:T(8,128)}', space=vmem, size = 0x1000, scoped, tag = 'scratch operand']
  #allocation5 [shape = 's32[2]{0}', space=sflag, size = 0x8, scoped, tag = 'scratch operand']
  #allocation6 [shape = 's32[]', space=sflag, size = 0x4, offset = 0, fixed_abs, tag = 'sflag constant byte address 0x0 - dummy sync flag']
  #allocation7 [shape = 's32[]', space=sflag, size = 0x4, offset = 0, fixed_abs, tag = 'sflag constant byte address 0x0 - dummy sync flag']
  %s0 = inlined_call_operand.vmem [shape: bf16[8,8,128], index: 0, kind: input, shape index: {}]
  %s1 = inlined_call_operand.vmem [shape: f32[8,128], index: 1, kind: input, shape index: {}]
  %s2 = inlined_call_operand.vmem [shape: f32[1,384], index: 2, kind: input, shape index: {}]
  %s3 = inlined_call_operand.vmem [shape: f32[1,128], index: 3, kind: input, shape index: {}]
  %s4 = inlined_call_operand.vmem [shape: bf16[128,384], index: 4, kind: input, shape index: {}]
  %s5 = inlined_call_operand.vmem [shape: bf16[128,384], index: 5, kind: input, shape index: {}]
  %s6 = inlined_call_operand.vmem [shape: f32[8,128], index: 6, kind: output, shape index: {}]
  %s7 = sld [smem:[#allocation0]]
  $region68: #{decoder_forward.3} parent=0
    _
  %s9 = ssub.s32 1, %s7
  %s10 = scalar_select 0, %s9, %s7
  // Predicated region
  $region2: #{decoder_forward.3} parent=0 // pred_check
    _
  $region3: #{decoder_forward.3} parent=0 // pred_check_branch
    %12 = sbr.rel (0) target = $region5
  $region4: #{decoder_forward.3} parent=0 // pred_region
    _
  $region5: #{decoder_forward.3} parent=0 // pred_fallthru
    _
  // Predicated region
  $region6: #{decoder_forward.3} parent=0 // pred_check
    _
  $region7: #{decoder_forward.3} parent=0 // pred_check_branch
    %14 = sbr.rel (0) target = $region9
  $region8: #{decoder_forward.3} parent=0 // pred_region
    _
  $region9: #{decoder_forward.3} parent=0 // pred_fallthru
    _
  // Predicated region
  $region10: #{decoder_forward.3} parent=0 // pred_check
    _
  $region11: #{decoder_forward.3} parent=0 // pred_check_branch
    %16 = sbr.rel (0) target = $region13
  $region12: #{decoder_forward.3} parent=0 // pred_region
    _
  $region13: #{decoder_forward.3} parent=0 // pred_fallthru
    _
  // Predicated region
  $region14: #{decoder_forward.3} parent=0 // pred_check
    _
  $region15: #{decoder_forward.3} parent=0 // pred_check_branch
    %18 = sbr.rel (0) target = $region17
  $region16: #{decoder_forward.3} parent=0 // pred_region
    _
  $region17: #{decoder_forward.3} parent=0 // pred_fallthru
    _
  %p19 = scmp.eq.s32.totalorder 0, 0
  // Predicated region
  $region18: #{decoder_forward.3} parent=0 // pred_check
    %p20 = pneg %p19
  $region19: #{decoder_forward.3} parent=0 // pred_check_branch
    %22 = sbr.rel (%p20) target = $region21
  $region20: #{decoder_forward.3} parent=0 // pred_region
    // Predicated region
    $region22: #{decoder_forward.3} parent=20 // pred_check
      _
    $region23: #{decoder_forward.3} parent=20 // pred_check_branch
      %24 = sbr.rel (0) target = $region25
    $region24: #{decoder_forward.3} parent=20 // pred_region
      loop: start=0, step=1, limit=1
      $region26: #{decoder_forward.3} parent=24 // loop_pre_header
        _
      $region27: #{decoder_forward.3} parent=24 // loop_header
        %s26 = sphi 0, %s30
        %p27 = scmp.ge.s32.totalorder %s26, 1
        %s31 = sphi %s4, %s4
        %s32 = sphi [#allocation2], [#allocation2]
      $region28: #{decoder_forward.3} parent=24 // loop_header_branch
        %29 = sbr.rel (%p27) target = $region32
      $region29: #{decoder_forward.3} parent=24 // loop_body
        %v33 = vld [vmem:[%s31] sm:$0xff]
        %34 = vst [vmem:[%s32] sm:$0xff] %v33
        %v35 = vld [vmem:[%s31 + $0x8] sm:$0xff]
        %36 = vst [vmem:[%s32 + $0x8] sm:$0xff] %v35
        %v37 = vld [vmem:[%s31 + $0x10] sm:$0xff]
        %38 = vst [vmem:[%s32 + $0x10] sm:$0xff] %v37
        %v39 = vld [vmem:[%s31 + $0x18] sm:$0xff]
        %40 = vst [vmem:[%s32 + $0x18] sm:$0xff] %v39
        %v41 = vld [vmem:[%s31 + $0x20] sm:$0xff]
        %42 = vst [vmem:[%s32 + $0x20] sm:$0xff] %v41
        %v43 = vld [vmem:[%s31 + $0x28] sm:$0xff]
        %44 = vst [vmem:[%s32 + $0x28] sm:$0xff] %v43
        %v45 = vld [vmem:[%s31 + $0x30] sm:$0xff]
        %46 = vst [vmem:[%s32 + $0x30] sm:$0xff] %v45
        %v47 = vld [vmem:[%s31 + $0x38] sm:$0xff]
        %48 = vst [vmem:[%s32 + $0x38] sm:$0xff] %v47
        %v49 = vld [vmem:[%s31 + $0x40] sm:$0xff]
        %50 = vst [vmem:[%s32 + $0x40] sm:$0xff] %v49
        %v51 = vld [vmem:[%s31 + $0x48] sm:$0xff]
        %52 = vst [vmem:[%s32 + $0x48] sm:$0xff] %v51
        %v53 = vld [vmem:[%s31 + $0x50] sm:$0xff]
        %54 = vst [vmem:[%s32 + $0x50] sm:$0xff] %v53
        %v55 = vld [vmem:[%s31 + $0x58] sm:$0xff]
        %56 = vst [vmem:[%s32 + $0x58] sm:$0xff] %v55
        %v57 = vld [vmem:[%s31 + $0x60] sm:$0xff]
        %58 = vst [vmem:[%s32 + $0x60] sm:$0xff] %v57
        %v59 = vld [vmem:[%s31 + $0x68] sm:$0xff]
        %60 = vst [vmem:[%s32 + $0x68] sm:$0xff] %v59
        %v61 = vld [vmem:[%s31 + $0x70] sm:$0xff]
        %62 = vst [vmem:[%s32 + $0x70] sm:$0xff] %v61
        %v63 = vld [vmem:[%s31 + $0x78] sm:$0xff]
        %64 = vst [vmem:[%s32 + $0x78] sm:$0xff] %v63
        %v65 = vld [vmem:[%s31 + $0x80] sm:$0xff]
        %66 = vst [vmem:[%s32 + $0x80] sm:$0xff] %v65
        %v67 = vld [vmem:[%s31 + $0x88] sm:$0xff]
        %68 = vst [vmem:[%s32 + $0x88] sm:$0xff] %v67
        %v69 = vld [vmem:[%s31 + $0x90] sm:$0xff]
        %70 = vst [vmem:[%s32 + $0x90] sm:$0xff] %v69
        %v71 = vld [vmem:[%s31 + $0x98] sm:$0xff]
        %72 = vst [vmem:[%s32 + $0x98] sm:$0xff] %v71
        %v73 = vld [vmem:[%s31 + $0xa0] sm:$0xff]
        %74 = vst [vmem:[%s32 + $0xa0] sm:$0xff] %v73
        %v75 = vld [vmem:[%s31 + $0xa8] sm:$0xff]
        %76 = vst [vmem:[%s32 + $0xa8] sm:$0xff] %v75
        %v77 = vld [vmem:[%s31 + $0xb0] sm:$0xff]
        %78 = vst [vmem:[%s32 + $0xb0] sm:$0xff] %v77
        %v79 = vld [vmem:[%s31 + $0xb8] sm:$0xff]
        %80 = vst [vmem:[%s32 + $0xb8] sm:$0xff] %v79
      $region30: #{decoder_forward.3} parent=24 // loop_footer
        %s30 = sadd.s32 1, %s26
      $region31: #{decoder_forward.3} parent=24 // loop_footer_branch
        %25 = sbr.rel target = $region27
      $region32: #{decoder_forward.3} parent=24 // loop_exit
        _
    $region25: #{decoder_forward.3} parent=20 // pred_fallthru
      _
    // Predicated region
    $region33: #{decoder_forward.3} parent=20 // pred_check
      _
    $region34: #{decoder_forward.3} parent=20 // pred_check_branch
      %82 = sbr.rel target = $region36
    $region35: #{decoder_forward.3} parent=20 // pred_region
      _
    $region36: #{decoder_forward.3} parent=20 // pred_fallthru
      _
    // Predicated region
    $region37: #{decoder_forward.3} parent=20 // pred_check
      _
    $region38: #{decoder_forward.3} parent=20 // pred_check_branch
      %85 = sbr.rel (0) target = $region40
    $region39: #{decoder_forward.3} parent=20 // pred_region
      %86 = vsyncadd [#allocation5], 3072
    $region40: #{decoder_forward.3} parent=20 // pred_fallthru
      _
    %s87 = scalar_lea.sflag [#allocation5], 1
    // Predicated region
    $region41: #{decoder_forward.3} parent=20 // pred_check
      _
    $region42: #{decoder_forward.3} parent=20 // pred_check_branch
      %89 = sbr.rel (0) target = $region44
    $region43: #{decoder_forward.3} parent=20 // pred_region
      loop: start=0, step=1, limit=1
      $region45: #{decoder_forward.3} parent=43 // loop_pre_header
        _
      $region46: #{decoder_forward.3} parent=43 // loop_header
        %s91 = sphi 0, %s95
        %p92 = scmp.ge.s32.totalorder %s91, 1
        %s96 = sphi %s5, %s5
        %s97 = sphi [#allocation3], [#allocation3]
      $region47: #{decoder_forward.3} parent=43 // loop_header_branch
        %94 = sbr.rel (%p92) target = $region51
      $region48: #{decoder_forward.3} parent=43 // loop_body
        %v98 = vld [vmem:[%s96] sm:$0xff]
        %99 = vst [vmem:[%s97] sm:$0xff] %v98
        %v100 = vld [vmem:[%s96 + $0x8] sm:$0xff]
        %101 = vst [vmem:[%s97 + $0x8] sm:$0xff] %v100
        %v102 = vld [vmem:[%s96 + $0x10] sm:$0xff]
        %103 = vst [vmem:[%s97 + $0x10] sm:$0xff] %v102
        %v104 = vld [vmem:[%s96 + $0x18] sm:$0xff]
        %105 = vst [vmem:[%s97 + $0x18] sm:$0xff] %v104
        %v106 = vld [vmem:[%s96 + $0x20] sm:$0xff]
        %107 = vst [vmem:[%s97 + $0x20] sm:$0xff] %v106
        %v108 = vld [vmem:[%s96 + $0x28] sm:$0xff]
        %109 = vst [vmem:[%s97 + $0x28] sm:$0xff] %v108
        %v110 = vld [vmem:[%s96 + $0x30] sm:$0xff]
        %111 = vst [vmem:[%s97 + $0x30] sm:$0xff] %v110
        %v112 = vld [vmem:[%s96 + $0x38] sm:$0xff]
        %113 = vst [vmem:[%s97 + $0x38] sm:$0xff] %v112
        %v114 = vld [vmem:[%s96 + $0x40] sm:$0xff]
        %115 = vst [vmem:[%s97 + $0x40] sm:$0xff] %v114
        %v116 = vld [vmem:[%s96 + $0x48] sm:$0xff]
        %117 = vst [vmem:[%s97 + $0x48] sm:$0xff] %v116
        %v118 = vld [vmem:[%s96 + $0x50] sm:$0xff]
        %119 = vst [vmem:[%s97 + $0x50] sm:$0xff] %v118
        %v120 = vld [vmem:[%s96 + $0x58] sm:$0xff]
        %121 = vst [vmem:[%s97 + $0x58] sm:$0xff] %v120
        %v122 = vld [vmem:[%s96 + $0x60] sm:$0xff]
        %123 = vst [vmem:[%s97 + $0x60] sm:$0xff] %v122
        %v124 = vld [vmem:[%s96 + $0x68] sm:$0xff]
        %125 = vst [vmem:[%s97 + $0x68] sm:$0xff] %v124
        %v126 = vld [vmem:[%s96 + $0x70] sm:$0xff]
        %127 = vst [vmem:[%s97 + $0x70] sm:$0xff] %v126
        %v128 = vld [vmem:[%s96 + $0x78] sm:$0xff]
        %129 = vst [vmem:[%s97 + $0x78] sm:$0xff] %v128
        %v130 = vld [vmem:[%s96 + $0x80] sm:$0xff]
        %131 = vst [vmem:[%s97 + $0x80] sm:$0xff] %v130
        %v132 = vld [vmem:[%s96 + $0x88] sm:$0xff]
        %133 = vst [vmem:[%s97 + $0x88] sm:$0xff] %v132
        %v134 = vld [vmem:[%s96 + $0x90] sm:$0xff]
        %135 = vst [vmem:[%s97 + $0x90] sm:$0xff] %v134
        %v136 = vld [vmem:[%s96 + $0x98] sm:$0xff]
        %137 = vst [vmem:[%s97 + $0x98] sm:$0xff] %v136
        %v138 = vld [vmem:[%s96 + $0xa0] sm:$0xff]
        %139 = vst [vmem:[%s97 + $0xa0] sm:$0xff] %v138
        %v140 = vld [vmem:[%s96 + $0xa8] sm:$0xff]
        %141 = vst [vmem:[%s97 + $0xa8] sm:$0xff] %v140
        %v142 = vld [vmem:[%s96 + $0xb0] sm:$0xff]
        %143 = vst [vmem:[%s97 + $0xb0] sm:$0xff] %v142
        %v144 = vld [vmem:[%s96 + $0xb8] sm:$0xff]
        %145 = vst [vmem:[%s97 + $0xb8] sm:$0xff] %v144
      $region49: #{decoder_forward.3} parent=43 // loop_footer
        %s95 = sadd.s32 1, %s91
      $region50: #{decoder_forward.3} parent=43 // loop_footer_branch
        %90 = sbr.rel target = $region46
      $region51: #{decoder_forward.3} parent=43 // loop_exit
        _
    $region44: #{decoder_forward.3} parent=20 // pred_fallthru
      _
    // Predicated region
    $region52: #{decoder_forward.3} parent=20 // pred_check
      _
    $region53: #{decoder_forward.3} parent=20 // pred_check_branch
      %147 = sbr.rel target = $region55
    $region54: #{decoder_forward.3} parent=20 // pred_region
      _
    $region55: #{decoder_forward.3} parent=20 // pred_fallthru
      _
    // Predicated region
    $region56: #{decoder_forward.3} parent=20 // pred_check
      _
    $region57: #{decoder_forward.3} parent=20 // pred_check_branch
      %150 = sbr.rel (0) target = $region59
    $region58: #{decoder_forward.3} parent=20 // pred_region
      %151 = vsyncadd %s87, 3072
    $region59: #{decoder_forward.3} parent=20 // pred_fallthru
      _
    %v152 = vld [vmem:[%s1] sm:$0xff]
    %153 = vst [vmem:[#allocation4] sm:$0xff] %v152
    %s154 = smul.u32 4, 16
    %s155 = smul.u32 %s154, 3
    %s156 = sshll.u32 %s155, 4
    %157 = dma.done [#allocation5], %s156
    %s158 = sshll.u32 %s155, 4
    %159 = dma.done %s87, %s158
  $region21: #{decoder_forward.3} parent=0 // pred_fallthru
    _
  %v160 = vld [vmem:[#allocation4] sm:$0xff]
  %v161 = vld [vmem:[%s0] sm:$0xf]
  %v162 = vld [vmem:[#allocation2] sm:$0xff]
  %v163 = vld [vmem:[#allocation2 + $0x8] sm:$0xf]
  %v164 = vld [vmem:[#allocation2 + $0xc] sm:$0xff]
  %v165 = vld [vmem:[#allocation2 + $0x14] sm:$0xf]
  %v166 = vld [vmem:[#allocation2 + $0x18] sm:$0xff]
  %v167 = vld [vmem:[#allocation2 + $0x20] sm:$0xf]
  %v168 = vld [vmem:[#allocation2 + $0x24] sm:$0xff]
  %v169 = vld [vmem:[#allocation2 + $0x2c] sm:$0xf]
  %v170 = vld [vmem:[#allocation2 + $0x30] sm:$0xff]
  %v171 = vld [vmem:[#allocation2 + $0x38] sm:$0xf]
  %v172 = vld [vmem:[#allocation2 + $0x3c] sm:$0xff]
  %v173 = vld [vmem:[#allocation2 + $0x44] sm:$0xf]
  %v174 = vld [vmem:[#allocation2 + $0x48] sm:$0xff]
  %v175 = vld [vmem:[#allocation2 + $0x50] sm:$0xf]
  %v176 = vld [vmem:[#allocation2 + $0x54] sm:$0xff]
  %v177 = vld [vmem:[#allocation2 + $0x5c] sm:$0xf]
  %v178 = vld [vmem:[#allocation2 + $0x60] sm:$0xff]
  %v179 = vld [vmem:[#allocation2 + $0x68] sm:$0xf]
  %v180 = vld [vmem:[#allocation2 + $0x6c] sm:$0xff]
  %v181 = vld [vmem:[#allocation2 + $0x74] sm:$0xf]
  %v182 = vld [vmem:[#allocation2 + $0x78] sm:$0xff]
  %v183 = vld [vmem:[#allocation2 + $0x80] sm:$0xf]
  %v184 = vld [vmem:[#allocation2 + $0x84] sm:$0xff]
  %v185 = vld [vmem:[#allocation2 + $0x8c] sm:$0xf]
  %v186 = vld [vmem:[#allocation2 + $0x90] sm:$0xff]
  %v187 = vld [vmem:[#allocation2 + $0x98] sm:$0xf]
  %v188 = vld [vmem:[#allocation2 + $0x9c] sm:$0xff]
  %v189 = vld [vmem:[#allocation2 + $0xa4] sm:$0xf]
  %v190 = vld [vmem:[#allocation2 + $0xa8] sm:$0xff]
  %v191 = vld [vmem:[#allocation2 + $0xb0] sm:$0xf]
  %v192 = vld [vmem:[#allocation2 + $0xb4] sm:$0xff]
  %v193 = vld [vmem:[#allocation2 + $0xbc] sm:$0xf]
  %v194 = vld [vmem:[%s2] sm:$0x7]
  %v196 = vperm.slane %v194, 0
  %v197 = vperm.slane %v194, 1
  %v198 = vperm.slane %v194, 2
  %v234 = vunpack.c.l.b16 %v162
  %v235 = vunpack.c.h.b16 %v162
  %v236 = vunpack.c.l.b16 %v163
  %v237 = vunpack.c.l.b16 %v164
  %v238 = vunpack.c.h.b16 %v164
  %v239 = vunpack.c.l.b16 %v165
  %v240 = vunpack.c.l.b16 %v166
  %v241 = vunpack.c.h.b16 %v166
  %v242 = vunpack.c.l.b16 %v167
  %v243 = vunpack.c.l.b16 %v168
  %v244 = vunpack.c.h.b16 %v168
  %v245 = vunpack.c.l.b16 %v169
  %v246 = vunpack.c.l.b16 %v170
  %v247 = vunpack.c.h.b16 %v170
  %v248 = vunpack.c.l.b16 %v171
  %v249 = vunpack.c.l.b16 %v172
  %v250 = vunpack.c.h.b16 %v172
  %v251 = vunpack.c.l.b16 %v173
  %v252 = vunpack.c.l.b16 %v174
  %v253 = vunpack.c.h.b16 %v174
  %v254 = vunpack.c.l.b16 %v175
  %v255 = vunpack.c.l.b16 %v176
  %v256 = vunpack.c.h.b16 %v176
  %v257 = vunpack.c.l.b16 %v177
  %v258 = vunpack.c.l.b16 %v178
  %v259 = vunpack.c.h.b16 %v178
  %v260 = vunpack.c.l.b16 %v179
  %v261 = vunpack.c.l.b16 %v180
  %v262 = vunpack.c.h.b16 %v180
  %v263 = vunpack.c.l.b16 %v181
  %v264 = vunpack.c.l.b16 %v182
  %v265 = vunpack.c.h.b16 %v182
  %v266 = vunpack.c.l.b16 %v183
  %v267 = vunpack.c.l.b16 %v184
  %v268 = vunpack.c.h.b16 %v184
  %v269 = vunpack.c.l.b16 %v185
  %v270 = vunpack.c.l.b16 %v186
  %v271 = vunpack.c.h.b16 %v186
  %v272 = vunpack.c.l.b16 %v187
  %v273 = vunpack.c.l.b16 %v188
  %v274 = vunpack.c.h.b16 %v188
  %v275 = vunpack.c.l.b16 %v189
  %v276 = vunpack.c.l.b16 %v190
  %v277 = vunpack.c.h.b16 %v190
  %v278 = vunpack.c.l.b16 %v191
  %v279 = vunpack.c.l.b16 %v192
  %v280 = vunpack.c.h.b16 %v192
  %v281 = vunpack.c.l.b16 %v193
  %v282 = vpack.c.b16 %v237, %v234
  %v283 = vpack.c.b16 %v238, %v235
  %v284 = vpack.c.b16 %v239, %v236
  %v285 = vpack.c.b16 %v243, %v240
  %v286 = vpack.c.b16 %v244, %v241
  %v287 = vpack.c.b16 %v245, %v242
  %v288 = vpack.c.b16 %v249, %v246
  %v289 = vpack.c.b16 %v250, %v247
  %v290 = vpack.c.b16 %v251, %v248
  %v291 = vpack.c.b16 %v255, %v252
  %v292 = vpack.c.b16 %v256, %v253
  %v293 = vpack.c.b16 %v257, %v254
  %v294 = vpack.c.b16 %v261, %v258
  %v295 = vpack.c.b16 %v262, %v259
  %v296 = vpack.c.b16 %v263, %v260
  %v297 = vpack.c.b16 %v267, %v264
  %v298 = vpack.c.b16 %v268, %v265
  %v299 = vpack.c.b16 %v269, %v266
  %v300 = vpack.c.b16 %v273, %v270
  %v301 = vpack.c.b16 %v274, %v271
  %v302 = vpack.c.b16 %v275, %v272
  %v303 = vpack.c.b16 %v279, %v276
  %v304 = vpack.c.b16 %v280, %v277
  %v305 = vpack.c.b16 %v281, %v278
  %330 = vmatpush.bf16.msra.mxu0 %v303
  %331 = vmatpush.bf16.msra.mxu0 %v300
  %332 = vmatpush.bf16.msra.mxu0 %v297
  %333 = vmatpush.bf16.msra.mxu0 %v294
  %334 = vmatpush.bf16.msra.mxu0 %v291
  %335 = vmatpush.bf16.msra.mxu0 %v288
  %336 = vmatpush.bf16.msra.mxu0 %v285
  %337 = vmatpush.bf16.msra.mxu0 %v282
  %338 = vmatmul.bf16.gmra.mxu0 %v161
  %v339 = vpop.f32.mrf.mxu0
  %v340 = vadd.f32 %v196, %v339
  %v341 = vpop.f32.mrf.mxu0
  %342 = vdwg.mxu0
  %343 = vmatpush.bf16.msra.mxu0 %v304
  %344 = vmatpush.bf16.msra.mxu0 %v301
  %345 = vmatpush.bf16.msra.mxu0 %v298
  %346 = vmatpush.bf16.msra.mxu0 %v295
  %347 = vmatpush.bf16.msra.mxu0 %v292
  %348 = vmatpush.bf16.msra.mxu0 %v289
  %349 = vmatpush.bf16.msra.mxu0 %v286
  %350 = vmatpush.bf16.msra.mxu0 %v283
  %351 = vmatmul.bf16.gmra.mxu0 %v161
  %v352 = vpop.f32.mrf.mxu0
  %v353 = vadd.f32 %v197, %v352
  %v354 = vpop.f32.mrf.mxu0
  %355 = vdwg.mxu0
  %356 = vmatpush.bf16.msra.mxu0 %v305
  %357 = vmatpush.bf16.msra.mxu0 %v302
  %358 = vmatpush.bf16.msra.mxu0 %v299
  %359 = vmatpush.bf16.msra.mxu0 %v296
  %360 = vmatpush.bf16.msra.mxu0 %v293
  %361 = vmatpush.bf16.msra.mxu0 %v290
  %362 = vmatpush.bf16.msra.mxu0 %v287
  %363 = vmatpush.bf16.msra.mxu0 %v284
  %364 = vmatmul.bf16.gmra.mxu0 %v161
  %v365 = vpop.f32.mrf.mxu0
  %v366 = vadd.f32 %v198, %v365
  %v367 = vpop.f32.mrf.mxu0
  %368 = vdwg.mxu0
  %v369 = vpack.c.bf16 %v160, %v160
  %v370 = vld [vmem:[#allocation3] sm:$0xff]
  %v371 = vld [vmem:[#allocation3 + $0x8] sm:$0xf]
  %v372 = vld [vmem:[#allocation3 + $0xc] sm:$0xff]
  %v373 = vld [vmem:[#allocation3 + $0x14] sm:$0xf]
  %v374 = vld [vmem:[#allocation3 + $0x18] sm:$0xff]
  %v375 = vld [vmem:[#allocation3 + $0x20] sm:$0xf]
  %v376 = vld [vmem:[#allocation3 + $0x24] sm:$0xff]
  %v377 = vld [vmem:[#allocation3 + $0x2c] sm:$0xf]
  %v378 = vld [vmem:[#allocation3 + $0x30] sm:$0xff]
  %v379 = vld [vmem:[#allocation3 + $0x38] sm:$0xf]
  %v380 = vld [vmem:[#allocation3 + $0x3c] sm:$0xff]
  %v381 = vld [vmem:[#allocation3 + $0x44] sm:$0xf]
  %v382 = vld [vmem:[#allocation3 + $0x48] sm:$0xff]
  %v383 = vld [vmem:[#allocation3 + $0x50] sm:$0xf]
  %v384 = vld [vmem:[#allocation3 + $0x54] sm:$0xff]
  %v385 = vld [vmem:[#allocation3 + $0x5c] sm:$0xf]
  %v386 = vld [vmem:[#allocation3 + $0x60] sm:$0xff]
  %v387 = vld [vmem:[#allocation3 + $0x68] sm:$0xf]
  %v388 = vld [vmem:[#allocation3 + $0x6c] sm:$0xff]
  %v389 = vld [vmem:[#allocation3 + $0x74] sm:$0xf]
  %v390 = vld [vmem:[#allocation3 + $0x78] sm:$0xff]
  %v391 = vld [vmem:[#allocation3 + $0x80] sm:$0xf]
  %v392 = vld [vmem:[#allocation3 + $0x84] sm:$0xff]
  %v393 = vld [vmem:[#allocation3 + $0x8c] sm:$0xf]
  %v394 = vld [vmem:[#allocation3 + $0x90] sm:$0xff]
  %v395 = vld [vmem:[#allocation3 + $0x98] sm:$0xf]
  %v396 = vld [vmem:[#allocation3 + $0x9c] sm:$0xff]
  %v397 = vld [vmem:[#allocation3 + $0xa4] sm:$0xf]
  %v398 = vld [vmem:[#allocation3 + $0xa8] sm:$0xff]
  %v399 = vld [vmem:[#allocation3 + $0xb0] sm:$0xf]
  %v400 = vld [vmem:[#allocation3 + $0xb4] sm:$0xff]
  %v401 = vld [vmem:[#allocation3 + $0xbc] sm:$0xf]
  %v434 = vunpack.c.l.b16 %v370
  %v435 = vunpack.c.h.b16 %v370
  %v436 = vunpack.c.l.b16 %v371
  %v437 = vunpack.c.l.b16 %v372
  %v438 = vunpack.c.h.b16 %v372
  %v439 = vunpack.c.l.b16 %v373
  %v440 = vunpack.c.l.b16 %v374
  %v441 = vunpack.c.h.b16 %v374
  %v442 = vunpack.c.l.b16 %v375
  %v443 = vunpack.c.l.b16 %v376
  %v444 = vunpack.c.h.b16 %v376
  %v445 = vunpack.c.l.b16 %v377
  %v446 = vunpack.c.l.b16 %v378
  %v447 = vunpack.c.h.b16 %v378
  %v448 = vunpack.c.l.b16 %v379
  %v449 = vunpack.c.l.b16 %v380
  %v450 = vunpack.c.h.b16 %v380
  %v451 = vunpack.c.l.b16 %v381
  %v452 = vunpack.c.l.b16 %v382
  %v453 = vunpack.c.h.b16 %v382
  %v454 = vunpack.c.l.b16 %v383
  %v455 = vunpack.c.l.b16 %v384
  %v456 = vunpack.c.h.b16 %v384
  %v457 = vunpack.c.l.b16 %v385
  %v458 = vunpack.c.l.b16 %v386
  %v459 = vunpack.c.h.b16 %v386
  %v460 = vunpack.c.l.b16 %v387
  %v461 = vunpack.c.l.b16 %v388
  %v462 = vunpack.c.h.b16 %v388
  %v463 = vunpack.c.l.b16 %v389
  %v464 = vunpack.c.l.b16 %v390
  %v465 = vunpack.c.h.b16 %v390
  %v466 = vunpack.c.l.b16 %v391
  %v467 = vunpack.c.l.b16 %v392
  %v468 = vunpack.c.h.b16 %v392
  %v469 = vunpack.c.l.b16 %v393
  %v470 = vunpack.c.l.b16 %v394
  %v471 = vunpack.c.h.b16 %v394
  %v472 = vunpack.c.l.b16 %v395
  %v473 = vunpack.c.l.b16 %v396
  %v474 = vunpack.c.h.b16 %v396
  %v475 = vunpack.c.l.b16 %v397
  %v476 = vunpack.c.l.b16 %v398
  %v477 = vunpack.c.h.b16 %v398
  %v478 = vunpack.c.l.b16 %v399
  %v479 = vunpack.c.l.b16 %v400
  %v480 = vunpack.c.h.b16 %v400
  %v481 = vunpack.c.l.b16 %v401
  %v482 = vpack.c.b16 %v437, %v434
  %v483 = vpack.c.b16 %v438, %v435
  %v484 = vpack.c.b16 %v439, %v436
  %v485 = vpack.c.b16 %v443, %v440
  %v486 = vpack.c.b16 %v444, %v441
  %v487 = vpack.c.b16 %v445, %v442
  %v488 = vpack.c.b16 %v449, %v446
  %v489 = vpack.c.b16 %v450, %v447
  %v490 = vpack.c.b16 %v451, %v448
  %v491 = vpack.c.b16 %v455, %v452
  %v492 = vpack.c.b16 %v456, %v453
  %v493 = vpack.c.b16 %v457, %v454
  %v494 = vpack.c.b16 %v461, %v458
  %v495 = vpack.c.b16 %v462, %v459
  %v496 = vpack.c.b16 %v463, %v460
  %v497 = vpack.c.b16 %v467, %v464
  %v498 = vpack.c.b16 %v468, %v465
  %v499 = vpack.c.b16 %v469, %v466
  %v500 = vpack.c.b16 %v473, %v470
  %v501 = vpack.c.b16 %v474, %v471
  %v502 = vpack.c.b16 %v475, %v472
  %v503 = vpack.c.b16 %v479, %v476
  %v504 = vpack.c.b16 %v480, %v477
  %v505 = vpack.c.b16 %v481, %v478
  %530 = vmatpush.bf16.msra.mxu0 %v503
  %531 = vmatpush.bf16.msra.mxu0 %v500
  %532 = vmatpush.bf16.msra.mxu0 %v497
  %533 = vmatpush.bf16.msra.mxu0 %v494
  %534 = vmatpush.bf16.msra.mxu0 %v491
  %535 = vmatpush.bf16.msra.mxu0 %v488
  %536 = vmatpush.bf16.msra.mxu0 %v485
  %537 = vmatpush.bf16.msra.mxu0 %v482
  %538 = vmatmul.bf16.gmra.mxu0 %v369
  %v539 = vpop.f32.mrf.mxu0
  %v540 = vadd.f32 0.0, %v539
  %v541 = vpop.f32.mrf.mxu0
  %542 = vdwg.mxu0
  %543 = vmatpush.bf16.msra.mxu0 %v504
  %544 = vmatpush.bf16.msra.mxu0 %v501
  %545 = vmatpush.bf16.msra.mxu0 %v498
  %546 = vmatpush.bf16.msra.mxu0 %v495
  %547 = vmatpush.bf16.msra.mxu0 %v492
  %548 = vmatpush.bf16.msra.mxu0 %v489
  %549 = vmatpush.bf16.msra.mxu0 %v486
  %550 = vmatpush.bf16.msra.mxu0 %v483
  %551 = vmatmul.bf16.gmra.mxu0 %v369
  %v552 = vpop.f32.mrf.mxu0
  %v553 = vadd.f32 0.0, %v552
  %v554 = vpop.f32.mrf.mxu0
  %555 = vdwg.mxu0
  %556 = vmatpush.bf16.msra.mxu0 %v505
  %557 = vmatpush.bf16.msra.mxu0 %v502
  %558 = vmatpush.bf16.msra.mxu0 %v499
  %559 = vmatpush.bf16.msra.mxu0 %v496
  %560 = vmatpush.bf16.msra.mxu0 %v493
  %561 = vmatpush.bf16.msra.mxu0 %v490
  %562 = vmatpush.bf16.msra.mxu0 %v487
  %563 = vmatpush.bf16.msra.mxu0 %v484
  %564 = vmatmul.bf16.gmra.mxu0 %v369
  %v565 = vpop.f32.mrf.mxu0
  %v566 = vadd.f32 0.0, %v565
  %v567 = vpop.f32.mrf.mxu0
  %568 = vdwg.mxu0
  %v569 = vadd.f32 %v340, %v540
  %v570 = vxor.u32 %v569, 2147483648
  %v571 = vmul.f32 %v570, 1.442695
  %v572 = vpow.pop %v571
  %v573 = vadd.f32 %v572, 1.0
  %v574 = vrcp.pop %v573
  %v575 = vmul.f32 %v573, %v574
  %v576 = vsub.f32 1.0, %v575
  %v577 = vmul.f32 %v574, %v576
  %v578 = vadd.f32 %v574, %v577
  %vm579 = vweird.f32 %v573
  %vm580 = vweird.f32 %v574
  %vm581 = vmor %vm579, %vm580
  %v582 = vsel %vm581, %v574, %v578
  %v583 = vand.u32 2147483647, %v573
  %vm584 = vcmp.eq.f32.partialorder %v583, 8.507059e+37
  %v585 = vand.u32 %v573, 2147483648
  %v586 = vor.u32 1.1754944e-38, %v585
  %v587 = vsel %vm584, %v586, %v582
  %v588 = vmul.f32 1.0, %v587
  %v589 = vadd.f32 %v353, %v553
  %v590 = vxor.u32 %v589, 2147483648
  %v591 = vmul.f32 %v590, 1.442695
  %v592 = vpow.pop %v591
  %v593 = vadd.f32 %v592, 1.0
  %v594 = vrcp.pop %v593
  %v595 = vmul.f32 %v593, %v594
  %v596 = vsub.f32 1.0, %v595
  %v597 = vmul.f32 %v594, %v596
  %v598 = vadd.f32 %v594, %v597
  %vm599 = vweird.f32 %v593
  %vm600 = vweird.f32 %v594
  %vm601 = vmor %vm599, %vm600
  %v602 = vsel %vm601, %v594, %v598
  %v603 = vand.u32 2147483647, %v593
  %vm604 = vcmp.eq.f32.partialorder %v603, 8.507059e+37
  %v605 = vand.u32 %v593, 2147483648
  %v606 = vor.u32 1.1754944e-38, %v605
  %v607 = vsel %vm604, %v606, %v602
  %v608 = vmul.f32 1.0, %v607
  %v609 = vld [vmem:[%s3] sm:$0x1]
  %v611 = vperm.slane %v609, 0
  %v613 = vadd.f32 %v566, %v611
  %v614 = vmul.f32 %v588, %v613
  %v615 = vadd.f32 %v366, %v614
  %v616 = vtanh.pop %v615
  %v617 = vsub.f32 1.0, %v608
  %v618 = vmul.f32 %v617, %v616
  %v619 = vmul.f32 %v608, %v160
  %v620 = vadd.f32 %v618, %v619
  %s621 = scalar_lea.vmem %s0, 4
  %v622 = vld [vmem:[%s621] sm:$0xf]
  %623 = vmatpush.bf16.msra.mxu0 %v303
  %624 = vmatpush.bf16.msra.mxu0 %v300
  %625 = vmatpush.bf16.msra.mxu0 %v297
  %626 = vmatpush.bf16.msra.mxu0 %v294
  %627 = vmatpush.bf16.msra.mxu0 %v291
  %628 = vmatpush.bf16.msra.mxu0 %v288
  %629 = vmatpush.bf16.msra.mxu0 %v285
  %630 = vmatpush.bf16.msra.mxu0 %v282
  %631 = vmatmul.bf16.gmra.mxu0 %v622
  %v632 = vpop.f32.mrf.mxu0
  %v633 = vadd.f32 %v196, %v632
  %v634 = vpop.f32.mrf.mxu0
  %635 = vdwg.mxu0
  %636 = vmatpush.bf16.msra.mxu0 %v304
  %637 = vmatpush.bf16.msra.mxu0 %v301
  %638 = vmatpush.bf16.msra.mxu0 %v298
  %639 = vmatpush.bf16.msra.mxu0 %v295
  %640 = vmatpush.bf16.msra.mxu0 %v292
  %641 = vmatpush.bf16.msra.mxu0 %v289
  %642 = vmatpush.bf16.msra.mxu0 %v286
  %643 = vmatpush.bf16.msra.mxu0 %v283
  %644 = vmatmul.bf16.gmra.mxu0 %v622
  %v645 = vpop.f32.mrf.mxu0
  %v646 = vadd.f32 %v197, %v645
  %v647 = vpop.f32.mrf.mxu0
  %648 = vdwg.mxu0
  %649 = vmatpush.bf16.msra.mxu0 %v305
  %650 = vmatpush.bf16.msra.mxu0 %v302
  %651 = vmatpush.bf16.msra.mxu0 %v299
  %652 = vmatpush.bf16.msra.mxu0 %v296
  %653 = vmatpush.bf16.msra.mxu0 %v293
  %654 = vmatpush.bf16.msra.mxu0 %v290
  %655 = vmatpush.bf16.msra.mxu0 %v287
  %656 = vmatpush.bf16.msra.mxu0 %v284
  %657 = vmatmul.bf16.gmra.mxu0 %v622
  %v658 = vpop.f32.mrf.mxu0
  %v659 = vadd.f32 %v198, %v658
  %v660 = vpop.f32.mrf.mxu0
  %661 = vdwg.mxu0
  %v662 = vpack.c.bf16 %v620, %v620
  %663 = vmatpush.bf16.msra.mxu0 %v503
  %664 = vmatpush.bf16.msra.mxu0 %v500
  %665 = vmatpush.bf16.msra.mxu0 %v497
  %666 = vmatpush.bf16.msra.mxu0 %v494
  %667 = vmatpush.bf16.msra.mxu0 %v491
  %668 = vmatpush.bf16.msra.mxu0 %v488
  %669 = vmatpush.bf16.msra.mxu0 %v485
  %670 = vmatpush.bf16.msra.mxu0 %v482
  %671 = vmatmul.bf16.gmra.mxu0 %v662
  %v672 = vpop.f32.mrf.mxu0
  %v673 = vadd.f32 0.0, %v672
  %v674 = vpop.f32.mrf.mxu0
  %675 = vdwg.mxu0
  %676 = vmatpush.bf16.msra.mxu0 %v504
  %677 = vmatpush.bf16.msra.mxu0 %v501
  %678 = vmatpush.bf16.msra.mxu0 %v498
  %679 = vmatpush.bf16.msra.mxu0 %v495
  %680 = vmatpush.bf16.msra.mxu0 %v492
  %681 = vmatpush.bf16.msra.mxu0 %v489
  %682 = vmatpush.bf16.msra.mxu0 %v486
  %683 = vmatpush.bf16.msra.mxu0 %v483
  %684 = vmatmul.bf16.gmra.mxu0 %v662
  %v685 = vpop.f32.mrf.mxu0
  %v686 = vadd.f32 0.0, %v685
  %v687 = vpop.f32.mrf.mxu0
  %688 = vdwg.mxu0
  %689 = vmatpush.bf16.msra.mxu0 %v505
  %690 = vmatpush.bf16.msra.mxu0 %v502
  %691 = vmatpush.bf16.msra.mxu0 %v499
  %692 = vmatpush.bf16.msra.mxu0 %v496
  %693 = vmatpush.bf16.msra.mxu0 %v493
  %694 = vmatpush.bf16.msra.mxu0 %v490
  %695 = vmatpush.bf16.msra.mxu0 %v487
  %696 = vmatpush.bf16.msra.mxu0 %v484
  %697 = vmatmul.bf16.gmra.mxu0 %v662
  %v698 = vpop.f32.mrf.mxu0
  %v699 = vadd.f32 0.0, %v698
  %v700 = vpop.f32.mrf.mxu0
  %701 = vdwg.mxu0
  %v702 = vadd.f32 %v633, %v673
  %v703 = vxor.u32 %v702, 2147483648
  %v704 = vmul.f32 %v703, 1.442695
  %v705 = vpow.pop %v704
  %v706 = vadd.f32 %v705, 1.0
  %v707 = vrcp.pop %v706
  %v708 = vmul.f32 %v706, %v707
  %v709 = vsub.f32 1.0, %v708
  %v710 = vmul.f32 %v707, %v709
  %v711 = vadd.f32 %v707, %v710
  %vm712 = vweird.f32 %v706
  %vm713 = vweird.f32 %v707
  %vm714 = vmor %vm712, %vm713
  %v715 = vsel %vm714, %v707, %v711
  %v716 = vand.u32 2147483647, %v706
  %vm717 = vcmp.eq.f32.partialorder %v716, 8.507059e+37
  %v718 = vand.u32 %v706, 2147483648
  %v719 = vor.u32 1.1754944e-38, %v718
  %v720 = vsel %vm717, %v719, %v715
  %v721 = vmul.f32 1.0, %v720
  %v722 = vadd.f32 %v646, %v686
  %v723 = vxor.u32 %v722, 2147483648
  %v724 = vmul.f32 %v723, 1.442695
  %v725 = vpow.pop %v724
  %v726 = vadd.f32 %v725, 1.0
  %v727 = vrcp.pop %v726
  %v728 = vmul.f32 %v726, %v727
  %v729 = vsub.f32 1.0, %v728
  %v730 = vmul.f32 %v727, %v729
  %v731 = vadd.f32 %v727, %v730
  %vm732 = vweird.f32 %v726
  %vm733 = vweird.f32 %v727
  %vm734 = vmor %vm732, %vm733
  %v735 = vsel %vm734, %v727, %v731
  %v736 = vand.u32 2147483647, %v726
  %vm737 = vcmp.eq.f32.partialorder %v736, 8.507059e+37
  %v738 = vand.u32 %v726, 2147483648
  %v739 = vor.u32 1.1754944e-38, %v738
  %v740 = vsel %vm737, %v739, %v735
  %v741 = vmul.f32 1.0, %v740
  %v742 = vadd.f32 %v699, %v611
  %v743 = vmul.f32 %v721, %v742
  %v744 = vadd.f32 %v659, %v743
  %v745 = vtanh.pop %v744
  %v746 = vsub.f32 1.0, %v741
  %v747 = vmul.f32 %v746, %v745
  %v748 = vmul.f32 %v741, %v620
  %v749 = vadd.f32 %v747, %v748
  %s750 = scalar_lea.vmem %s0, 8
  %v751 = vld [vmem:[%s750] sm:$0xf]
  %752 = vmatpush.bf16.msra.mxu0 %v303
  %753 = vmatpush.bf16.msra.mxu0 %v300
  %754 = vmatpush.bf16.msra.mxu0 %v297
  %755 = vmatpush.bf16.msra.mxu0 %v294
  %756 = vmatpush.bf16.msra.mxu0 %v291
  %757 = vmatpush.bf16.msra.mxu0 %v288
  %758 = vmatpush.bf16.msra.mxu0 %v285
  %759 = vmatpush.bf16.msra.mxu0 %v282
  %760 = vmatmul.bf16.gmra.mxu0 %v751
  %v761 = vpop.f32.mrf.mxu0
  %v762 = vadd.f32 %v196, %v761
  %v763 = vpop.f32.mrf.mxu0
  %764 = vdwg.mxu0
  %765 = vmatpush.bf16.msra.mxu0 %v304
  %766 = vmatpush.bf16.msra.mxu0 %v301
  %767 = vmatpush.bf16.msra.mxu0 %v298
  %768 = vmatpush.bf16.msra.mxu0 %v295
  %769 = vmatpush.bf16.msra.mxu0 %v292
  %770 = vmatpush.bf16.msra.mxu0 %v289
  %771 = vmatpush.bf16.msra.mxu0 %v286
  %772 = vmatpush.bf16.msra.mxu0 %v283
  %773 = vmatmul.bf16.gmra.mxu0 %v751
  %v774 = vpop.f32.mrf.mxu0
  %v775 = vadd.f32 %v197, %v774
  %v776 = vpop.f32.mrf.mxu0
  %777 = vdwg.mxu0
  %778 = vmatpush.bf16.msra.mxu0 %v305
  %779 = vmatpush.bf16.msra.mxu0 %v302
  %780 = vmatpush.bf16.msra.mxu0 %v299
  %781 = vmatpush.bf16.msra.mxu0 %v296
  %782 = vmatpush.bf16.msra.mxu0 %v293
  %783 = vmatpush.bf16.msra.mxu0 %v290
  %784 = vmatpush.bf16.msra.mxu0 %v287
  %785 = vmatpush.bf16.msra.mxu0 %v284
  %786 = vmatmul.bf16.gmra.mxu0 %v751
  %v787 = vpop.f32.mrf.mxu0
  %v788 = vadd.f32 %v198, %v787
  %v789 = vpop.f32.mrf.mxu0
  %790 = vdwg.mxu0
  %v791 = vpack.c.bf16 %v749, %v749
  %792 = vmatpush.bf16.msra.mxu0 %v503
  %793 = vmatpush.bf16.msra.mxu0 %v500
  %794 = vmatpush.bf16.msra.mxu0 %v497
  %795 = vmatpush.bf16.msra.mxu0 %v494
  %796 = vmatpush.bf16.msra.mxu0 %v491
  %797 = vmatpush.bf16.msra.mxu0 %v488
  %798 = vmatpush.bf16.msra.mxu0 %v485
  %799 = vmatpush.bf16.msra.mxu0 %v482
  %800 = vmatmul.bf16.gmra.mxu0 %v791
  %v801 = vpop.f32.mrf.mxu0
  %v802 = vadd.f32 0.0, %v801
  %v803 = vpop.f32.mrf.mxu0
  %804 = vdwg.mxu0
  %805 = vmatpush.bf16.msra.mxu0 %v504
  %806 = vmatpush.bf16.msra.mxu0 %v501
  %807 = vmatpush.bf16.msra.mxu0 %v498
  %808 = vmatpush.bf16.msra.mxu0 %v495
  %809 = vmatpush.bf16.msra.mxu0 %v492
  %810 = vmatpush.bf16.msra.mxu0 %v489
  %811 = vmatpush.bf16.msra.mxu0 %v486
  %812 = vmatpush.bf16.msra.mxu0 %v483
  %813 = vmatmul.bf16.gmra.mxu0 %v791
  %v814 = vpop.f32.mrf.mxu0
  %v815 = vadd.f32 0.0, %v814
  %v816 = vpop.f32.mrf.mxu0
  %817 = vdwg.mxu0
  %818 = vmatpush.bf16.msra.mxu0 %v505
  %819 = vmatpush.bf16.msra.mxu0 %v502
  %820 = vmatpush.bf16.msra.mxu0 %v499
  %821 = vmatpush.bf16.msra.mxu0 %v496
  %822 = vmatpush.bf16.msra.mxu0 %v493
  %823 = vmatpush.bf16.msra.mxu0 %v490
  %824 = vmatpush.bf16.msra.mxu0 %v487
  %825 = vmatpush.bf16.msra.mxu0 %v484
  %826 = vmatmul.bf16.gmra.mxu0 %v791
  %v827 = vpop.f32.mrf.mxu0
  %v828 = vadd.f32 0.0, %v827
  %v829 = vpop.f32.mrf.mxu0
  %830 = vdwg.mxu0
  %v831 = vadd.f32 %v762, %v802
  %v832 = vxor.u32 %v831, 2147483648
  %v833 = vmul.f32 %v832, 1.442695
  %v834 = vpow.pop %v833
  %v835 = vadd.f32 %v834, 1.0
  %v836 = vrcp.pop %v835
  %v837 = vmul.f32 %v835, %v836
  %v838 = vsub.f32 1.0, %v837
  %v839 = vmul.f32 %v836, %v838
  %v840 = vadd.f32 %v836, %v839
  %vm841 = vweird.f32 %v835
  %vm842 = vweird.f32 %v836
  %vm843 = vmor %vm841, %vm842
  %v844 = vsel %vm843, %v836, %v840
  %v845 = vand.u32 2147483647, %v835
  %vm846 = vcmp.eq.f32.partialorder %v845, 8.507059e+37
  %v847 = vand.u32 %v835, 2147483648
  %v848 = vor.u32 1.1754944e-38, %v847
  %v849 = vsel %vm846, %v848, %v844
  %v850 = vmul.f32 1.0, %v849
  %v851 = vadd.f32 %v775, %v815
  %v852 = vxor.u32 %v851, 2147483648
  %v853 = vmul.f32 %v852, 1.442695
  %v854 = vpow.pop %v853
  %v855 = vadd.f32 %v854, 1.0
  %v856 = vrcp.pop %v855
  %v857 = vmul.f32 %v855, %v856
  %v858 = vsub.f32 1.0, %v857
  %v859 = vmul.f32 %v856, %v858
  %v860 = vadd.f32 %v856, %v859
  %vm861 = vweird.f32 %v855
  %vm862 = vweird.f32 %v856
  %vm863 = vmor %vm861, %vm862
  %v864 = vsel %vm863, %v856, %v860
  %v865 = vand.u32 2147483647, %v855
  %vm866 = vcmp.eq.f32.partialorder %v865, 8.507059e+37
  %v867 = vand.u32 %v855, 2147483648
  %v868 = vor.u32 1.1754944e-38, %v867
  %v869 = vsel %vm866, %v868, %v864
  %v870 = vmul.f32 1.0, %v869
  %v871 = vadd.f32 %v828, %v611
  %v872 = vmul.f32 %v850, %v871
  %v873 = vadd.f32 %v788, %v872
  %v874 = vtanh.pop %v873
  %v875 = vsub.f32 1.0, %v870
  %v876 = vmul.f32 %v875, %v874
  %v877 = vmul.f32 %v870, %v749
  %v878 = vadd.f32 %v876, %v877
  %s879 = scalar_lea.vmem %s0, 12
  %v880 = vld [vmem:[%s879] sm:$0xf]
  %881 = vmatpush.bf16.msra.mxu0 %v303
  %882 = vmatpush.bf16.msra.mxu0 %v300
  %883 = vmatpush.bf16.msra.mxu0 %v297
  %884 = vmatpush.bf16.msra.mxu0 %v294
  %885 = vmatpush.bf16.msra.mxu0 %v291
  %886 = vmatpush.bf16.msra.mxu0 %v288
  %887 = vmatpush.bf16.msra.mxu0 %v285
  %888 = vmatpush.bf16.msra.mxu0 %v282
  %889 = vmatmul.bf16.gmra.mxu0 %v880
  %v890 = vpop.f32.mrf.mxu0
  %v891 = vadd.f32 %v196, %v890
  %v892 = vpop.f32.mrf.mxu0
  %893 = vdwg.mxu0
  %894 = vmatpush.bf16.msra.mxu0 %v304
  %895 = vmatpush.bf16.msra.mxu0 %v301
  %896 = vmatpush.bf16.msra.mxu0 %v298
  %897 = vmatpush.bf16.msra.mxu0 %v295
  %898 = vmatpush.bf16.msra.mxu0 %v292
  %899 = vmatpush.bf16.msra.mxu0 %v289
  %900 = vmatpush.bf16.msra.mxu0 %v286
  %901 = vmatpush.bf16.msra.mxu0 %v283
  %902 = vmatmul.bf16.gmra.mxu0 %v880
  %v903 = vpop.f32.mrf.mxu0
  %v904 = vadd.f32 %v197, %v903
  %v905 = vpop.f32.mrf.mxu0
  %906 = vdwg.mxu0
  %907 = vmatpush.bf16.msra.mxu0 %v305
  %908 = vmatpush.bf16.msra.mxu0 %v302
  %909 = vmatpush.bf16.msra.mxu0 %v299
  %910 = vmatpush.bf16.msra.mxu0 %v296
  %911 = vmatpush.bf16.msra.mxu0 %v293
  %912 = vmatpush.bf16.msra.mxu0 %v290
  %913 = vmatpush.bf16.msra.mxu0 %v287
  %914 = vmatpush.bf16.msra.mxu0 %v284
  %915 = vmatmul.bf16.gmra.mxu0 %v880
  %v916 = vpop.f32.mrf.mxu0
  %v917 = vadd.f32 %v198, %v916
  %v918 = vpop.f32.mrf.mxu0
  %919 = vdwg.mxu0
  %v920 = vpack.c.bf16 %v878, %v878
  %921 = vmatpush.bf16.msra.mxu0 %v503
  %922 = vmatpush.bf16.msra.mxu0 %v500
  %923 = vmatpush.bf16.msra.mxu0 %v497
  %924 = vmatpush.bf16.msra.mxu0 %v494
  %925 = vmatpush.bf16.msra.mxu0 %v491
  %926 = vmatpush.bf16.msra.mxu0 %v488
  %927 = vmatpush.bf16.msra.mxu0 %v485
  %928 = vmatpush.bf16.msra.mxu0 %v482
  %929 = vmatmul.bf16.gmra.mxu0 %v920
  %v930 = vpop.f32.mrf.mxu0
  %v931 = vadd.f32 0.0, %v930
  %v932 = vpop.f32.mrf.mxu0
  %933 = vdwg.mxu0
  %934 = vmatpush.bf16.msra.mxu0 %v504
  %935 = vmatpush.bf16.msra.mxu0 %v501
  %936 = vmatpush.bf16.msra.mxu0 %v498
  %937 = vmatpush.bf16.msra.mxu0 %v495
  %938 = vmatpush.bf16.msra.mxu0 %v492
  %939 = vmatpush.bf16.msra.mxu0 %v489
  %940 = vmatpush.bf16.msra.mxu0 %v486
  %941 = vmatpush.bf16.msra.mxu0 %v483
  %942 = vmatmul.bf16.gmra.mxu0 %v920
  %v943 = vpop.f32.mrf.mxu0
  %v944 = vadd.f32 0.0, %v943
  %v945 = vpop.f32.mrf.mxu0
  %946 = vdwg.mxu0
  %947 = vmatpush.bf16.msra.mxu0 %v505
  %948 = vmatpush.bf16.msra.mxu0 %v502
  %949 = vmatpush.bf16.msra.mxu0 %v499
  %950 = vmatpush.bf16.msra.mxu0 %v496
  %951 = vmatpush.bf16.msra.mxu0 %v493
  %952 = vmatpush.bf16.msra.mxu0 %v490
  %953 = vmatpush.bf16.msra.mxu0 %v487
  %954 = vmatpush.bf16.msra.mxu0 %v484
  %955 = vmatmul.bf16.gmra.mxu0 %v920
  %v956 = vpop.f32.mrf.mxu0
  %v957 = vadd.f32 0.0, %v956
  %v958 = vpop.f32.mrf.mxu0
  %959 = vdwg.mxu0
  %v960 = vadd.f32 %v891, %v931
  %v961 = vxor.u32 %v960, 2147483648
  %v962 = vmul.f32 %v961, 1.442695
  %v963 = vpow.pop %v962
  %v964 = vadd.f32 %v963, 1.0
  %v965 = vrcp.pop %v964
  %v966 = vmul.f32 %v964, %v965
  %v967 = vsub.f32 1.0, %v966
  %v968 = vmul.f32 %v965, %v967
  %v969 = vadd.f32 %v965, %v968
  %vm970 = vweird.f32 %v964
  %vm971 = vweird.f32 %v965
  %vm972 = vmor %vm970, %vm971
  %v973 = vsel %vm972, %v965, %v969
  %v974 = vand.u32 2147483647, %v964
  %vm975 = vcmp.eq.f32.partialorder %v974, 8.507059e+37
  %v976 = vand.u32 %v964, 2147483648
  %v977 = vor.u32 1.1754944e-38, %v976
  %v978 = vsel %vm975, %v977, %v973
  %v979 = vmul.f32 1.0, %v978
  %v980 = vadd.f32 %v904, %v944
  %v981 = vxor.u32 %v980, 2147483648
  %v982 = vmul.f32 %v981, 1.442695
  %v983 = vpow.pop %v982
  %v984 = vadd.f32 %v983, 1.0
  %v985 = vrcp.pop %v984
  %v986 = vmul.f32 %v984, %v985
  %v987 = vsub.f32 1.0, %v986
  %v988 = vmul.f32 %v985, %v987
  %v989 = vadd.f32 %v985, %v988
  %vm990 = vweird.f32 %v984
  %vm991 = vweird.f32 %v985
  %vm992 = vmor %vm990, %vm991
  %v993 = vsel %vm992, %v985, %v989
  %v994 = vand.u32 2147483647, %v984
  %vm995 = vcmp.eq.f32.partialorder %v994, 8.507059e+37
  %v996 = vand.u32 %v984, 2147483648
  %v997 = vor.u32 1.1754944e-38, %v996
  %v998 = vsel %vm995, %v997, %v993
  %v999 = vmul.f32 1.0, %v998
  %v1000 = vadd.f32 %v957, %v611
  %v1001 = vmul.f32 %v979, %v1000
  %v1002 = vadd.f32 %v917, %v1001
  %v1003 = vtanh.pop %v1002
  %v1004 = vsub.f32 1.0, %v999
  %v1005 = vmul.f32 %v1004, %v1003
  %v1006 = vmul.f32 %v999, %v878
  %v1007 = vadd.f32 %v1005, %v1006
  %s1008 = scalar_lea.vmem %s0, 16
  %v1009 = vld [vmem:[%s1008] sm:$0xf]
  %1010 = vmatpush.bf16.msra.mxu0 %v303
  %1011 = vmatpush.bf16.msra.mxu0 %v300
  %1012 = vmatpush.bf16.msra.mxu0 %v297
  %1013 = vmatpush.bf16.msra.mxu0 %v294
  %1014 = vmatpush.bf16.msra.mxu0 %v291
  %1015 = vmatpush.bf16.msra.mxu0 %v288
  %1016 = vmatpush.bf16.msra.mxu0 %v285
  %1017 = vmatpush.bf16.msra.mxu0 %v282
  %1018 = vmatmul.bf16.gmra.mxu0 %v1009
  %v1019 = vpop.f32.mrf.mxu0
  %v1020 = vadd.f32 %v196, %v1019
  %v1021 = vpop.f32.mrf.mxu0
  %1022 = vdwg.mxu0
  %1023 = vmatpush.bf16.msra.mxu0 %v304
  %1024 = vmatpush.bf16.msra.mxu0 %v301
  %1025 = vmatpush.bf16.msra.mxu0 %v298
  %1026 = vmatpush.bf16.msra.mxu0 %v295
  %1027 = vmatpush.bf16.msra.mxu0 %v292
  %1028 = vmatpush.bf16.msra.mxu0 %v289
  %1029 = vmatpush.bf16.msra.mxu0 %v286
  %1030 = vmatpush.bf16.msra.mxu0 %v283
  %1031 = vmatmul.bf16.gmra.mxu0 %v1009
  %v1032 = vpop.f32.mrf.mxu0
  %v1033 = vadd.f32 %v197, %v1032
  %v1034 = vpop.f32.mrf.mxu0
  %1035 = vdwg.mxu0
  %1036 = vmatpush.bf16.msra.mxu0 %v305
  %1037 = vmatpush.bf16.msra.mxu0 %v302
  %1038 = vmatpush.bf16.msra.mxu0 %v299
  %1039 = vmatpush.bf16.msra.mxu0 %v296
  %1040 = vmatpush.bf16.msra.mxu0 %v293
  %1041 = vmatpush.bf16.msra.mxu0 %v290
  %1042 = vmatpush.bf16.msra.mxu0 %v287
  %1043 = vmatpush.bf16.msra.mxu0 %v284
  %1044 = vmatmul.bf16.gmra.mxu0 %v1009
  %v1045 = vpop.f32.mrf.mxu0
  %v1046 = vadd.f32 %v198, %v1045
  %v1047 = vpop.f32.mrf.mxu0
  %1048 = vdwg.mxu0
  %v1049 = vpack.c.bf16 %v1007, %v1007
  %1050 = vmatpush.bf16.msra.mxu0 %v503
  %1051 = vmatpush.bf16.msra.mxu0 %v500
  %1052 = vmatpush.bf16.msra.mxu0 %v497
  %1053 = vmatpush.bf16.msra.mxu0 %v494
  %1054 = vmatpush.bf16.msra.mxu0 %v491
  %1055 = vmatpush.bf16.msra.mxu0 %v488
  %1056 = vmatpush.bf16.msra.mxu0 %v485
  %1057 = vmatpush.bf16.msra.mxu0 %v482
  %1058 = vmatmul.bf16.gmra.mxu0 %v1049
  %v1059 = vpop.f32.mrf.mxu0
  %v1060 = vadd.f32 0.0, %v1059
  %v1061 = vpop.f32.mrf.mxu0
  %1062 = vdwg.mxu0
  %1063 = vmatpush.bf16.msra.mxu0 %v504
  %1064 = vmatpush.bf16.msra.mxu0 %v501
  %1065 = vmatpush.bf16.msra.mxu0 %v498
  %1066 = vmatpush.bf16.msra.mxu0 %v495
  %1067 = vmatpush.bf16.msra.mxu0 %v492
  %1068 = vmatpush.bf16.msra.mxu0 %v489
  %1069 = vmatpush.bf16.msra.mxu0 %v486
  %1070 = vmatpush.bf16.msra.mxu0 %v483
  %1071 = vmatmul.bf16.gmra.mxu0 %v1049
  %v1072 = vpop.f32.mrf.mxu0
  %v1073 = vadd.f32 0.0, %v1072
  %v1074 = vpop.f32.mrf.mxu0
  %1075 = vdwg.mxu0
  %1076 = vmatpush.bf16.msra.mxu0 %v505
  %1077 = vmatpush.bf16.msra.mxu0 %v502
  %1078 = vmatpush.bf16.msra.mxu0 %v499
  %1079 = vmatpush.bf16.msra.mxu0 %v496
  %1080 = vmatpush.bf16.msra.mxu0 %v493
  %1081 = vmatpush.bf16.msra.mxu0 %v490
  %1082 = vmatpush.bf16.msra.mxu0 %v487
  %1083 = vmatpush.bf16.msra.mxu0 %v484
  %1084 = vmatmul.bf16.gmra.mxu0 %v1049
  %v1085 = vpop.f32.mrf.mxu0
  %v1086 = vadd.f32 0.0, %v1085
  %v1087 = vpop.f32.mrf.mxu0
  %1088 = vdwg.mxu0
  %v1089 = vadd.f32 %v1020, %v1060
  %v1090 = vxor.u32 %v1089, 2147483648
  %v1091 = vmul.f32 %v1090, 1.442695
  %v1092 = vpow.pop %v1091
  %v1093 = vadd.f32 %v1092, 1.0
  %v1094 = vrcp.pop %v1093
  %v1095 = vmul.f32 %v1093, %v1094
  %v1096 = vsub.f32 1.0, %v1095
  %v1097 = vmul.f32 %v1094, %v1096
  %v1098 = vadd.f32 %v1094, %v1097
  %vm1099 = vweird.f32 %v1093
  %vm1100 = vweird.f32 %v1094
  %vm1101 = vmor %vm1099, %vm1100
  %v1102 = vsel %vm1101, %v1094, %v1098
  %v1103 = vand.u32 2147483647, %v1093
  %vm1104 = vcmp.eq.f32.partialorder %v1103, 8.507059e+37
  %v1105 = vand.u32 %v1093, 2147483648
  %v1106 = vor.u32 1.1754944e-38, %v1105
  %v1107 = vsel %vm1104, %v1106, %v1102
  %v1108 = vmul.f32 1.0, %v1107
  %v1109 = vadd.f32 %v1033, %v1073
  %v1110 = vxor.u32 %v1109, 2147483648
  %v1111 = vmul.f32 %v1110, 1.442695
  %v1112 = vpow.pop %v1111
  %v1113 = vadd.f32 %v1112, 1.0
  %v1114 = vrcp.pop %v1113
  %v1115 = vmul.f32 %v1113, %v1114
  %v1116 = vsub.f32 1.0, %v1115
  %v1117 = vmul.f32 %v1114, %v1116
  %v1118 = vadd.f32 %v1114, %v1117
  %vm1119 = vweird.f32 %v1113
  %vm1120 = vweird.f32 %v1114
  %vm1121 = vmor %vm1119, %vm1120
  %v1122 = vsel %vm1121, %v1114, %v1118
  %v1123 = vand.u32 2147483647, %v1113
  %vm1124 = vcmp.eq.f32.partialorder %v1123, 8.507059e+37
  %v1125 = vand.u32 %v1113, 2147483648
  %v1126 = vor.u32 1.1754944e-38, %v1125
  %v1127 = vsel %vm1124, %v1126, %v1122
  %v1128 = vmul.f32 1.0, %v1127
  %v1129 = vadd.f32 %v1086, %v611
  %v1130 = vmul.f32 %v1108, %v1129
  %v1131 = vadd.f32 %v1046, %v1130
  %v1132 = vtanh.pop %v1131
  %v1133 = vsub.f32 1.0, %v1128
  %v1134 = vmul.f32 %v1133, %v1132
  %v1135 = vmul.f32 %v1128, %v1007
  %v1136 = vadd.f32 %v1134, %v1135
  %s1137 = scalar_lea.vmem %s0, 20
  %v1138 = vld [vmem:[%s1137] sm:$0xf]
  %1139 = vmatpush.bf16.msra.mxu0 %v303
  %1140 = vmatpush.bf16.msra.mxu0 %v300
  %1141 = vmatpush.bf16.msra.mxu0 %v297
  %1142 = vmatpush.bf16.msra.mxu0 %v294
  %1143 = vmatpush.bf16.msra.mxu0 %v291
  %1144 = vmatpush.bf16.msra.mxu0 %v288
  %1145 = vmatpush.bf16.msra.mxu0 %v285
  %1146 = vmatpush.bf16.msra.mxu0 %v282
  %1147 = vmatmul.bf16.gmra.mxu0 %v1138
  %v1148 = vpop.f32.mrf.mxu0
  %v1149 = vadd.f32 %v196, %v1148
  %v1150 = vpop.f32.mrf.mxu0
  %1151 = vdwg.mxu0
  %1152 = vmatpush.bf16.msra.mxu0 %v304
  %1153 = vmatpush.bf16.msra.mxu0 %v301
  %1154 = vmatpush.bf16.msra.mxu0 %v298
  %1155 = vmatpush.bf16.msra.mxu0 %v295
  %1156 = vmatpush.bf16.msra.mxu0 %v292
  %1157 = vmatpush.bf16.msra.mxu0 %v289
  %1158 = vmatpush.bf16.msra.mxu0 %v286
  %1159 = vmatpush.bf16.msra.mxu0 %v283
  %1160 = vmatmul.bf16.gmra.mxu0 %v1138
  %v1161 = vpop.f32.mrf.mxu0
  %v1162 = vadd.f32 %v197, %v1161
  %v1163 = vpop.f32.mrf.mxu0
  %1164 = vdwg.mxu0
  %1165 = vmatpush.bf16.msra.mxu0 %v305
  %1166 = vmatpush.bf16.msra.mxu0 %v302
  %1167 = vmatpush.bf16.msra.mxu0 %v299
  %1168 = vmatpush.bf16.msra.mxu0 %v296
  %1169 = vmatpush.bf16.msra.mxu0 %v293
  %1170 = vmatpush.bf16.msra.mxu0 %v290
  %1171 = vmatpush.bf16.msra.mxu0 %v287
  %1172 = vmatpush.bf16.msra.mxu0 %v284
  %1173 = vmatmul.bf16.gmra.mxu0 %v1138
  %v1174 = vpop.f32.mrf.mxu0
  %v1175 = vadd.f32 %v198, %v1174
  %v1176 = vpop.f32.mrf.mxu0
  %1177 = vdwg.mxu0
  %v1178 = vpack.c.bf16 %v1136, %v1136
  %1179 = vmatpush.bf16.msra.mxu0 %v503
  %1180 = vmatpush.bf16.msra.mxu0 %v500
  %1181 = vmatpush.bf16.msra.mxu0 %v497
  %1182 = vmatpush.bf16.msra.mxu0 %v494
  %1183 = vmatpush.bf16.msra.mxu0 %v491
  %1184 = vmatpush.bf16.msra.mxu0 %v488
  %1185 = vmatpush.bf16.msra.mxu0 %v485
  %1186 = vmatpush.bf16.msra.mxu0 %v482
  %1187 = vmatmul.bf16.gmra.mxu0 %v1178
  %v1188 = vpop.f32.mrf.mxu0
  %v1189 = vadd.f32 0.0, %v1188
  %v1190 = vpop.f32.mrf.mxu0
  %1191 = vdwg.mxu0
  %1192 = vmatpush.bf16.msra.mxu0 %v504
  %1193 = vmatpush.bf16.msra.mxu0 %v501
  %1194 = vmatpush.bf16.msra.mxu0 %v498
  %1195 = vmatpush.bf16.msra.mxu0 %v495
  %1196 = vmatpush.bf16.msra.mxu0 %v492
  %1197 = vmatpush.bf16.msra.mxu0 %v489
  %1198 = vmatpush.bf16.msra.mxu0 %v486
  %1199 = vmatpush.bf16.msra.mxu0 %v483
  %1200 = vmatmul.bf16.gmra.mxu0 %v1178
  %v1201 = vpop.f32.mrf.mxu0
  %v1202 = vadd.f32 0.0, %v1201
  %v1203 = vpop.f32.mrf.mxu0
  %1204 = vdwg.mxu0
  %1205 = vmatpush.bf16.msra.mxu0 %v505
  %1206 = vmatpush.bf16.msra.mxu0 %v502
  %1207 = vmatpush.bf16.msra.mxu0 %v499
  %1208 = vmatpush.bf16.msra.mxu0 %v496
  %1209 = vmatpush.bf16.msra.mxu0 %v493
  %1210 = vmatpush.bf16.msra.mxu0 %v490
  %1211 = vmatpush.bf16.msra.mxu0 %v487
  %1212 = vmatpush.bf16.msra.mxu0 %v484
  %1213 = vmatmul.bf16.gmra.mxu0 %v1178
  %v1214 = vpop.f32.mrf.mxu0
  %v1215 = vadd.f32 0.0, %v1214
  %v1216 = vpop.f32.mrf.mxu0
  %1217 = vdwg.mxu0
  %v1218 = vadd.f32 %v1149, %v1189
  %v1219 = vxor.u32 %v1218, 2147483648
  %v1220 = vmul.f32 %v1219, 1.442695
  %v1221 = vpow.pop %v1220
  %v1222 = vadd.f32 %v1221, 1.0
  %v1223 = vrcp.pop %v1222
  %v1224 = vmul.f32 %v1222, %v1223
  %v1225 = vsub.f32 1.0, %v1224
  %v1226 = vmul.f32 %v1223, %v1225
  %v1227 = vadd.f32 %v1223, %v1226
  %vm1228 = vweird.f32 %v1222
  %vm1229 = vweird.f32 %v1223
  %vm1230 = vmor %vm1228, %vm1229
  %v1231 = vsel %vm1230, %v1223, %v1227
  %v1232 = vand.u32 2147483647, %v1222
  %vm1233 = vcmp.eq.f32.partialorder %v1232, 8.507059e+37
  %v1234 = vand.u32 %v1222, 2147483648
  %v1235 = vor.u32 1.1754944e-38, %v1234
  %v1236 = vsel %vm1233, %v1235, %v1231
  %v1237 = vmul.f32 1.0, %v1236
  %v1238 = vadd.f32 %v1162, %v1202
  %v1239 = vxor.u32 %v1238, 2147483648
  %v1240 = vmul.f32 %v1239, 1.442695
  %v1241 = vpow.pop %v1240
  %v1242 = vadd.f32 %v1241, 1.0
  %v1243 = vrcp.pop %v1242
  %v1244 = vmul.f32 %v1242, %v1243
  %v1245 = vsub.f32 1.0, %v1244
  %v1246 = vmul.f32 %v1243, %v1245
  %v1247 = vadd.f32 %v1243, %v1246
  %vm1248 = vweird.f32 %v1242
  %vm1249 = vweird.f32 %v1243
  %vm1250 = vmor %vm1248, %vm1249
  %v1251 = vsel %vm1250, %v1243, %v1247
  %v1252 = vand.u32 2147483647, %v1242
  %vm1253 = vcmp.eq.f32.partialorder %v1252, 8.507059e+37
  %v1254 = vand.u32 %v1242, 2147483648
  %v1255 = vor.u32 1.1754944e-38, %v1254
  %v1256 = vsel %vm1253, %v1255, %v1251
  %v1257 = vmul.f32 1.0, %v1256
  %v1258 = vadd.f32 %v1215, %v611
  %v1259 = vmul.f32 %v1237, %v1258
  %v1260 = vadd.f32 %v1175, %v1259
  %v1261 = vtanh.pop %v1260
  %v1262 = vsub.f32 1.0, %v1257
  %v1263 = vmul.f32 %v1262, %v1261
  %v1264 = vmul.f32 %v1257, %v1136
  %v1265 = vadd.f32 %v1263, %v1264
  %s1266 = scalar_lea.vmem %s0, 24
  %v1267 = vld [vmem:[%s1266] sm:$0xf]
  %1268 = vmatpush.bf16.msra.mxu0 %v303
  %1269 = vmatpush.bf16.msra.mxu0 %v300
  %1270 = vmatpush.bf16.msra.mxu0 %v297
  %1271 = vmatpush.bf16.msra.mxu0 %v294
  %1272 = vmatpush.bf16.msra.mxu0 %v291
  %1273 = vmatpush.bf16.msra.mxu0 %v288
  %1274 = vmatpush.bf16.msra.mxu0 %v285
  %1275 = vmatpush.bf16.msra.mxu0 %v282
  %1276 = vmatmul.bf16.gmra.mxu0 %v1267
  %v1277 = vpop.f32.mrf.mxu0
  %v1278 = vadd.f32 %v196, %v1277
  %v1279 = vpop.f32.mrf.mxu0
  %1280 = vdwg.mxu0
  %1281 = vmatpush.bf16.msra.mxu0 %v304
  %1282 = vmatpush.bf16.msra.mxu0 %v301
  %1283 = vmatpush.bf16.msra.mxu0 %v298
  %1284 = vmatpush.bf16.msra.mxu0 %v295
  %1285 = vmatpush.bf16.msra.mxu0 %v292
  %1286 = vmatpush.bf16.msra.mxu0 %v289
  %1287 = vmatpush.bf16.msra.mxu0 %v286
  %1288 = vmatpush.bf16.msra.mxu0 %v283
  %1289 = vmatmul.bf16.gmra.mxu0 %v1267
  %v1290 = vpop.f32.mrf.mxu0
  %v1291 = vadd.f32 %v197, %v1290
  %v1292 = vpop.f32.mrf.mxu0
  %1293 = vdwg.mxu0
  %1294 = vmatpush.bf16.msra.mxu0 %v305
  %1295 = vmatpush.bf16.msra.mxu0 %v302
  %1296 = vmatpush.bf16.msra.mxu0 %v299
  %1297 = vmatpush.bf16.msra.mxu0 %v296
  %1298 = vmatpush.bf16.msra.mxu0 %v293
  %1299 = vmatpush.bf16.msra.mxu0 %v290
  %1300 = vmatpush.bf16.msra.mxu0 %v287
  %1301 = vmatpush.bf16.msra.mxu0 %v284
  %1302 = vmatmul.bf16.gmra.mxu0 %v1267
  %v1303 = vpop.f32.mrf.mxu0
  %v1304 = vadd.f32 %v198, %v1303
  %v1305 = vpop.f32.mrf.mxu0
  %1306 = vdwg.mxu0
  %v1307 = vpack.c.bf16 %v1265, %v1265
  %1308 = vmatpush.bf16.msra.mxu0 %v503
  %1309 = vmatpush.bf16.msra.mxu0 %v500
  %1310 = vmatpush.bf16.msra.mxu0 %v497
  %1311 = vmatpush.bf16.msra.mxu0 %v494
  %1312 = vmatpush.bf16.msra.mxu0 %v491
  %1313 = vmatpush.bf16.msra.mxu0 %v488
  %1314 = vmatpush.bf16.msra.mxu0 %v485
  %1315 = vmatpush.bf16.msra.mxu0 %v482
  %1316 = vmatmul.bf16.gmra.mxu0 %v1307
  %v1317 = vpop.f32.mrf.mxu0
  %v1318 = vadd.f32 0.0, %v1317
  %v1319 = vpop.f32.mrf.mxu0
  %1320 = vdwg.mxu0
  %1321 = vmatpush.bf16.msra.mxu0 %v504
  %1322 = vmatpush.bf16.msra.mxu0 %v501
  %1323 = vmatpush.bf16.msra.mxu0 %v498
  %1324 = vmatpush.bf16.msra.mxu0 %v495
  %1325 = vmatpush.bf16.msra.mxu0 %v492
  %1326 = vmatpush.bf16.msra.mxu0 %v489
  %1327 = vmatpush.bf16.msra.mxu0 %v486
  %1328 = vmatpush.bf16.msra.mxu0 %v483
  %1329 = vmatmul.bf16.gmra.mxu0 %v1307
  %v1330 = vpop.f32.mrf.mxu0
  %v1331 = vadd.f32 0.0, %v1330
  %v1332 = vpop.f32.mrf.mxu0
  %1333 = vdwg.mxu0
  %1334 = vmatpush.bf16.msra.mxu0 %v505
  %1335 = vmatpush.bf16.msra.mxu0 %v502
  %1336 = vmatpush.bf16.msra.mxu0 %v499
  %1337 = vmatpush.bf16.msra.mxu0 %v496
  %1338 = vmatpush.bf16.msra.mxu0 %v493
  %1339 = vmatpush.bf16.msra.mxu0 %v490
  %1340 = vmatpush.bf16.msra.mxu0 %v487
  %1341 = vmatpush.bf16.msra.mxu0 %v484
  %1342 = vmatmul.bf16.gmra.mxu0 %v1307
  %v1343 = vpop.f32.mrf.mxu0
  %v1344 = vadd.f32 0.0, %v1343
  %v1345 = vpop.f32.mrf.mxu0
  %1346 = vdwg.mxu0
  %v1347 = vadd.f32 %v1278, %v1318
  %v1348 = vxor.u32 %v1347, 2147483648
  %v1349 = vmul.f32 %v1348, 1.442695
  %v1350 = vpow.pop %v1349
  %v1351 = vadd.f32 %v1350, 1.0
  %v1352 = vrcp.pop %v1351
  %v1353 = vmul.f32 %v1351, %v1352
  %v1354 = vsub.f32 1.0, %v1353
  %v1355 = vmul.f32 %v1352, %v1354
  %v1356 = vadd.f32 %v1352, %v1355
  %vm1357 = vweird.f32 %v1351
  %vm1358 = vweird.f32 %v1352
  %vm1359 = vmor %vm1357, %vm1358
  %v1360 = vsel %vm1359, %v1352, %v1356
  %v1361 = vand.u32 2147483647, %v1351
  %vm1362 = vcmp.eq.f32.partialorder %v1361, 8.507059e+37
  %v1363 = vand.u32 %v1351, 2147483648
  %v1364 = vor.u32 1.1754944e-38, %v1363
  %v1365 = vsel %vm1362, %v1364, %v1360
  %v1366 = vmul.f32 1.0, %v1365
  %v1367 = vadd.f32 %v1291, %v1331
  %v1368 = vxor.u32 %v1367, 2147483648
  %v1369 = vmul.f32 %v1368, 1.442695
  %v1370 = vpow.pop %v1369
  %v1371 = vadd.f32 %v1370, 1.0
  %v1372 = vrcp.pop %v1371
  %v1373 = vmul.f32 %v1371, %v1372
  %v1374 = vsub.f32 1.0, %v1373
  %v1375 = vmul.f32 %v1372, %v1374
  %v1376 = vadd.f32 %v1372, %v1375
  %vm1377 = vweird.f32 %v1371
  %vm1378 = vweird.f32 %v1372
  %vm1379 = vmor %vm1377, %vm1378
  %v1380 = vsel %vm1379, %v1372, %v1376
  %v1381 = vand.u32 2147483647, %v1371
  %vm1382 = vcmp.eq.f32.partialorder %v1381, 8.507059e+37
  %v1383 = vand.u32 %v1371, 2147483648
  %v1384 = vor.u32 1.1754944e-38, %v1383
  %v1385 = vsel %vm1382, %v1384, %v1380
  %v1386 = vmul.f32 1.0, %v1385
  %v1387 = vadd.f32 %v1344, %v611
  %v1388 = vmul.f32 %v1366, %v1387
  %v1389 = vadd.f32 %v1304, %v1388
  %v1390 = vtanh.pop %v1389
  %v1391 = vsub.f32 1.0, %v1386
  %v1392 = vmul.f32 %v1391, %v1390
  %v1393 = vmul.f32 %v1386, %v1265
  %v1394 = vadd.f32 %v1392, %v1393
  %s1395 = scalar_lea.vmem %s0, 28
  %v1396 = vld [vmem:[%s1395] sm:$0xf]
  %1397 = vmatpush.bf16.msra.mxu0 %v303
  %1398 = vmatpush.bf16.msra.mxu0 %v300
  %1399 = vmatpush.bf16.msra.mxu0 %v297
  %1400 = vmatpush.bf16.msra.mxu0 %v294
  %1401 = vmatpush.bf16.msra.mxu0 %v291
  %1402 = vmatpush.bf16.msra.mxu0 %v288
  %1403 = vmatpush.bf16.msra.mxu0 %v285
  %1404 = vmatpush.bf16.msra.mxu0 %v282
  %1405 = vmatmul.bf16.gmra.mxu0 %v1396
  %v1406 = vpop.f32.mrf.mxu0
  %v1407 = vadd.f32 %v196, %v1406
  %v1408 = vpop.f32.mrf.mxu0
  %1409 = vdwg.mxu0
  %1410 = vmatpush.bf16.msra.mxu0 %v304
  %1411 = vmatpush.bf16.msra.mxu0 %v301
  %1412 = vmatpush.bf16.msra.mxu0 %v298
  %1413 = vmatpush.bf16.msra.mxu0 %v295
  %1414 = vmatpush.bf16.msra.mxu0 %v292
  %1415 = vmatpush.bf16.msra.mxu0 %v289
  %1416 = vmatpush.bf16.msra.mxu0 %v286
  %1417 = vmatpush.bf16.msra.mxu0 %v283
  %1418 = vmatmul.bf16.gmra.mxu0 %v1396
  %v1419 = vpop.f32.mrf.mxu0
  %v1420 = vadd.f32 %v197, %v1419
  %v1421 = vpop.f32.mrf.mxu0
  %1422 = vdwg.mxu0
  %1423 = vmatpush.bf16.msra.mxu0 %v305
  %1424 = vmatpush.bf16.msra.mxu0 %v302
  %1425 = vmatpush.bf16.msra.mxu0 %v299
  %1426 = vmatpush.bf16.msra.mxu0 %v296
  %1427 = vmatpush.bf16.msra.mxu0 %v293
  %1428 = vmatpush.bf16.msra.mxu0 %v290
  %1429 = vmatpush.bf16.msra.mxu0 %v287
  %1430 = vmatpush.bf16.msra.mxu0 %v284
  %1431 = vmatmul.bf16.gmra.mxu0 %v1396
  %v1432 = vpop.f32.mrf.mxu0
  %v1433 = vadd.f32 %v198, %v1432
  %v1434 = vpop.f32.mrf.mxu0
  %1435 = vdwg.mxu0
  %v1436 = vpack.c.bf16 %v1394, %v1394
  %1437 = vmatpush.bf16.msra.mxu0 %v503
  %1438 = vmatpush.bf16.msra.mxu0 %v500
  %1439 = vmatpush.bf16.msra.mxu0 %v497
  %1440 = vmatpush.bf16.msra.mxu0 %v494
  %1441 = vmatpush.bf16.msra.mxu0 %v491
  %1442 = vmatpush.bf16.msra.mxu0 %v488
  %1443 = vmatpush.bf16.msra.mxu0 %v485
  %1444 = vmatpush.bf16.msra.mxu0 %v482
  %1445 = vmatmul.bf16.gmra.mxu0 %v1436
  %v1446 = vpop.f32.mrf.mxu0
  %v1447 = vadd.f32 0.0, %v1446
  %v1448 = vpop.f32.mrf.mxu0
  %1449 = vdwg.mxu0
  %1450 = vmatpush.bf16.msra.mxu0 %v504
  %1451 = vmatpush.bf16.msra.mxu0 %v501
  %1452 = vmatpush.bf16.msra.mxu0 %v498
  %1453 = vmatpush.bf16.msra.mxu0 %v495
  %1454 = vmatpush.bf16.msra.mxu0 %v492
  %1455 = vmatpush.bf16.msra.mxu0 %v489
  %1456 = vmatpush.bf16.msra.mxu0 %v486
  %1457 = vmatpush.bf16.msra.mxu0 %v483
  %1458 = vmatmul.bf16.gmra.mxu0 %v1436
  %v1459 = vpop.f32.mrf.mxu0
  %v1460 = vadd.f32 0.0, %v1459
  %v1461 = vpop.f32.mrf.mxu0
  %1462 = vdwg.mxu0
  %1463 = vmatpush.bf16.msra.mxu0 %v505
  %1464 = vmatpush.bf16.msra.mxu0 %v502
  %1465 = vmatpush.bf16.msra.mxu0 %v499
  %1466 = vmatpush.bf16.msra.mxu0 %v496
  %1467 = vmatpush.bf16.msra.mxu0 %v493
  %1468 = vmatpush.bf16.msra.mxu0 %v490
  %1469 = vmatpush.bf16.msra.mxu0 %v487
  %1470 = vmatpush.bf16.msra.mxu0 %v484
  %1471 = vmatmul.bf16.gmra.mxu0 %v1436
  %v1472 = vpop.f32.mrf.mxu0
  %v1473 = vadd.f32 0.0, %v1472
  %v1474 = vpop.f32.mrf.mxu0
  %1475 = vdwg.mxu0
  %v1476 = vadd.f32 %v1407, %v1447
  %v1477 = vxor.u32 %v1476, 2147483648
  %v1478 = vmul.f32 %v1477, 1.442695
  %v1479 = vpow.pop %v1478
  %v1480 = vadd.f32 %v1479, 1.0
  %v1481 = vrcp.pop %v1480
  %v1482 = vmul.f32 %v1480, %v1481
  %v1483 = vsub.f32 1.0, %v1482
  %v1484 = vmul.f32 %v1481, %v1483
  %v1485 = vadd.f32 %v1481, %v1484
  %vm1486 = vweird.f32 %v1480
  %vm1487 = vweird.f32 %v1481
  %vm1488 = vmor %vm1486, %vm1487
  %v1489 = vsel %vm1488, %v1481, %v1485
  %v1490 = vand.u32 2147483647, %v1480
  %vm1491 = vcmp.eq.f32.partialorder %v1490, 8.507059e+37
  %v1492 = vand.u32 %v1480, 2147483648
  %v1493 = vor.u32 1.1754944e-38, %v1492
  %v1494 = vsel %vm1491, %v1493, %v1489
  %v1495 = vmul.f32 1.0, %v1494
  %v1496 = vadd.f32 %v1420, %v1460
  %v1497 = vxor.u32 %v1496, 2147483648
  %v1498 = vmul.f32 %v1497, 1.442695
  %v1499 = vpow.pop %v1498
  %v1500 = vadd.f32 %v1499, 1.0
  %v1501 = vrcp.pop %v1500
  %v1502 = vmul.f32 %v1500, %v1501
  %v1503 = vsub.f32 1.0, %v1502
  %v1504 = vmul.f32 %v1501, %v1503
  %v1505 = vadd.f32 %v1501, %v1504
  %vm1506 = vweird.f32 %v1500
  %vm1507 = vweird.f32 %v1501
  %vm1508 = vmor %vm1506, %vm1507
  %v1509 = vsel %vm1508, %v1501, %v1505
  %v1510 = vand.u32 2147483647, %v1500
  %vm1511 = vcmp.eq.f32.partialorder %v1510, 8.507059e+37
  %v1512 = vand.u32 %v1500, 2147483648
  %v1513 = vor.u32 1.1754944e-38, %v1512
  %v1514 = vsel %vm1511, %v1513, %v1509
  %v1515 = vmul.f32 1.0, %v1514
  %v1516 = vadd.f32 %v1473, %v611
  %v1517 = vmul.f32 %v1495, %v1516
  %v1518 = vadd.f32 %v1433, %v1517
  %v1519 = vtanh.pop %v1518
  %v1520 = vsub.f32 1.0, %v1515
  %v1521 = vmul.f32 %v1520, %v1519
  %v1522 = vmul.f32 %v1515, %v1394
  %v1523 = vadd.f32 %v1521, %v1522
  %1524 = vst [vmem:[#allocation4] sm:$0xff] %v1523
  %1525 = vst [vmem:[%s6] sm:$0xff] %v1523
  // Predicated region
  $region60: #{decoder_forward.3} parent=0 // pred_check
    _
  $region61: #{decoder_forward.3} parent=0 // pred_check_branch
    %1527 = sbr.rel (0) target = $region63
  $region62: #{decoder_forward.3} parent=0 // pred_region
    _
  $region63: #{decoder_forward.3} parent=0 // pred_fallthru
    _
  // Predicated region
  $region64: #{decoder_forward.3} parent=0 // pred_check
    _
  $region65: #{decoder_forward.3} parent=0 // pred_check_branch
    %1529 = sbr.rel (0) target = $region67
  $region66: #{decoder_forward.3} parent=0 // pred_region
    _
  $region67: #{decoder_forward.3} parent=0 // pred_fallthru
    _
  %1530 = vsyncmov [#allocation5]
  %s1531 = vpop.sfrf %1530
  %p1532 = scmp.eq.s32.totalorder %s1531, 0
  %p1533 = pneg %p1532
  %1535 = shalt.err (%p1533)
  %s1536 = scalar_lea.sflag [#allocation5], 1
  %1537 = vsyncmov %s1536
  %s1538 = vpop.sfrf %1537
  %p1539 = scmp.eq.s32.totalorder %s1538, 0
  %p1540 = pneg %p1539
  %1542 = shalt.err (%p1540)

</llo_original>
